<compile_context>
chip_gen: v7x
topology: tpu7x:2x2x1
jax: 0.10.0
libtpu: 0.0.40
codegen_flags: <defaults>
</compile_context>

<pallas_src>
import jax
import jax.numpy as jnp
import numpy as np
from jax.experimental import pallas as pl
from jax.experimental.pallas import tpu as pltpu


# Patch-source table for the 3x3 conv expressed on the parity-decomposed,
# 1-px-padded views of x.  For output-row parity r and kernel offset kh the
# needed source row x[2i + r + kh - 1] lives in parity view p at padded
# offset e, with p = (r+kh-1) % 2 and e = (r+kh-1 - p)//2 + 1.  Only these
# four (p, e) combinations ever occur per spatial axis:
_PE = ((1, 0), (0, 1), (1, 1), (0, 2))


def _mix_kernel(xd_ref, xs_ref, w_ref, b_ref, a_ref, out_ref):
    """One batch element.

    xd_ref : (1, H+2, W+2, CD)       padded deep feature (NHWC)
    xs_ref : (1, 2, 2, H+2, W+2, C)  parity-decomposed, padded shallow feature
    w_ref  : (9*CD + 16*C, 4*C)      fused (beta/gamma-folded) weight matrix
    b_ref  : (1, 4*C)                fused bias  (b0*beta + b1*gamma, tiled x4)
    a_ref  : (1, 4*C)                PReLU slope (tiled over the 4 parities)
    out_ref: (1, H, W, 4*C)          output, channel = (2r+s)*C + c
    """
    _, H, W, C4 = out_ref.shape

    # Gather every shifted window once and concatenate along the contraction
    # (channel/lane) axis -> one lane-dense matmul instead of 52 tiny ones.
    pieces = []
    for a in range(3):                      # transposed-conv tap superset
        for b in range(3):
            pieces.append(xd_ref[0, a:a + H, b:b + W, :])
    for (pt, et) in _PE:                    # 3x3 conv taps on parity views
        for (pq, eq) in _PE:
            pieces.append(xs_ref[0, pt, pq, et:et + H, eq:eq + W, :])
    patches = jnp.concatenate(pieces, axis=-1)            # (H, W, K)
    K = patches.shape[-1]

    z = jnp.dot(patches.reshape(H * W, K), w_ref[...],
                preferred_element_type=jnp.float32)        # (H*W, 4*C)
    z = z + b_ref[...]                                      # fused bias
    out = jnp.where(z >= 0, z, a_ref[...] * z)              # per-channel PReLU
    out_ref[...] = out.reshape(1, H, W, C4).astype(out_ref.dtype)


def mix_forward(x_nchw, xd_nchw, params):
    """x_nchw: (B, C, 2H, 2W); xd_nchw: (B, CD, H, W). Returns (B, C, 2H, 2W)."""
    B, C, H2, W2 = x_nchw.shape
    _, CD, H, W = xd_nchw.shape
    assert H2 == 2 * H and W2 == 2 * W
    f32 = jnp.float32

    x = jnp.transpose(x_nchw, (0, 2, 3, 1)).astype(f32)     # (B, 2H, 2W, C)
    xd = jnp.transpose(xd_nchw, (0, 2, 3, 1)).astype(f32)   # (B, H,  W,  CD)

    # Parity decomposition of x + 1-px halo on each parity view / on xd.
    # TODO(synk): for production H/W, move halo+parity handling in-kernel and
    # row-tile the grid so blocks fit v7x's 64 MiB VMEM; whole-image blocks
    # are fine at these sizes.
    x_sub = x.reshape(B, H, 2, W, 2, C).transpose(0, 2, 4, 1, 3, 5)
    x_sub_p = jnp.pad(x_sub, ((0, 0), (0, 0), (0, 0), (1, 1), (1, 1), (0, 0)))
    xd_p = jnp.pad(xd, ((0, 0), (1, 1), (1, 1), (0, 0)))

    # --- fold beta/gamma into the weights & bias (trace-time) ---------------
    beta, gamma = params["beta"], params["gamma"]
    w0s = jnp.transpose(params["w0"], (2, 3, 0, 1)) * beta   # (4,4,CD,C)  ConvT
    w1s = jnp.transpose(params["w1"], (2, 3, 1, 0)) * gamma  # (3,3,C, C)  Conv
    bias = params["b0"] * beta + params["b1"] * gamma        # (C,)

    # --- build the fused (9*CD + 16*C, 4*C) weight matrix --------------------
    KA = 9 * CD
    K = KA + 16 * C
    Wbig = jnp.zeros((K, 4 * C), f32)
    for r in range(2):
        for s in range(2):
            cols = slice((2 * r + s) * C, (2 * r + s + 1) * C)
            # ConvTranspose2d: out[2i+r,2j+s] += xd_pad[i+r+u, j+s+v] @ W0[3-r-2u, 3-s-2v]
            for u in range(2):
                for v in range(2):
                    a, b = r + u, s + v
                    rows = slice((3 * a + b) * CD, (3 * a + b + 1) * CD)
                    Wbig = Wbig.at[rows, cols].set(w0s[3 - r - 2 * u, 3 - s - 2 * v])
            # Conv2d 3x3: taps routed to the right parity view / offset.
            for kh in range(3):
                for kw in range(3):
                    t = r + kh - 1
                    q = s + kw - 1
                    pt, et = t % 2, (t - t % 2) // 2 + 1
                    pq, eq = q % 2, (q - q % 2) // 2 + 1
                    idx = _PE.index((pt, et)) * 4 + _PE.index((pq, eq))
                    rows = slice(KA + idx * C, KA + (idx + 1) * C)
                    Wbig = Wbig.at[rows, cols].set(w1s[kh, kw])

    bias4 = jnp.tile(bias, 4).reshape(1, 4 * C)
    alpha4 = jnp.tile(params["alpha"], 4).reshape(1, 4 * C)

    out4 = pl.pallas_call(
        _mix_kernel,
        out_shape=jax.ShapeDtypeStruct((B, H, W, 4 * C), f32),
        grid=(B,),
        in_specs=[
            pl.BlockSpec((1, H + 2, W + 2, CD), lambda b: (b, 0, 0, 0)),
            pl.BlockSpec((1, 2, 2, H + 2, W + 2, C), lambda b: (b, 0, 0, 0, 0, 0)),
            pl.BlockSpec((K, 4 * C), lambda b: (0, 0)),
            pl.BlockSpec((1, 4 * C), lambda b: (0, 0)),
            pl.BlockSpec((1, 4 * C), lambda b: (0, 0)),
        ],
        out_specs=pl.BlockSpec((1, H, W, 4 * C), lambda b: (b, 0, 0, 0)),
        compiler_params=pltpu.CompilerParams(
            dimension_semantics=("parallel",),          # v7x: shard batch over 2 TCs
            vmem_limit_bytes=32 * 1024 * 1024),
    )(xd_p, x_sub_p, Wbig, bias4, alpha4)

    # (B,H,W,4C) -> (B,C,2H,2W): parity interleave + NCHW in ONE transpose.
    out = out4.reshape(B, H, W, 2, 2, C).transpose(0, 5, 1, 3, 2, 4)
    return out.reshape(B, C, 2 * H, 2 * W)


def mix_reference(x_nchw, xd_nchw, params):
    """Pure-JAX (XLA conv) reference with identical semantics, for verification."""
    x = jnp.transpose(x_nchw, (0, 2, 3, 1)).astype(jnp.float32)
    xd = jnp.transpose(xd_nchw, (0, 2, 3, 1)).astype(jnp.float32)
    w0_hwio = jnp.flip(jnp.transpose(params["w0"], (2, 3, 0, 1)), axis=(0, 1))
    y0 = jax.lax.conv_general_dilated(
        xd, w0_hwio, window_strides=(1, 1), padding=((2, 2), (2, 2)),
        lhs_dilation=(2, 2),
        dimension_numbers=("NHWC", "HWIO", "NHWC")) + params["b0"]
    w1_hwio = jnp.transpose(params["w1"], (2, 3, 1, 0))
    y1 = jax.lax.conv_general_dilated(
        x, w1_hwio, window_strides=(1, 1), padding=((1, 1), (1, 1)),
        dimension_numbers=("NHWC", "HWIO", "NHWC")) + params["b1"]
    z = y0 * params["beta"] + y1 * params["gamma"]
    out = jnp.where(z >= 0, z, params["alpha"] * z)
    return jnp.transpose(out, (0, 3, 1, 2))


if __name__ == "__main__":
    B, C, CD, H, W = 2, 8, 8, 8, 8          # x: (B, C, 2H, 2W), x_deep: (B, CD, H, W)
    key = jax.random.PRNGKey(0)
    k = jax.random.split(key, 6)
    x = jax.random.normal(k[0], (B, C, 2 * H, 2 * W), jnp.float32)
    x_deep = jax.random.normal(k[1], (B, CD, H, W), jnp.float32)
    params = {
        "w0": jax.random.normal(k[2], (CD, C, 4, 4), jnp.float32) * 0.1,  # ConvTranspose2d weight
        "b0": jax.random.normal(k[3], (C,), jnp.float32) * 0.1,
        "w1": jax.random.normal(k[4], (C, C, 3, 3), jnp.float32) * 0.1,   # Conv2d weight
        "b1": jax.random.normal(k[5], (C,), jnp.float32) * 0.1,
        "beta": jnp.ones((C,), jnp.float32),          # nn.Parameter(torch.ones((1,c,1,1)))
        "gamma": jnp.ones((C,), jnp.float32),         # nn.Parameter(torch.ones((1,c,1,1)))
        "alpha": jnp.full((C,), 0.2, jnp.float32),    # PReLU(c, 0.2)
    }

    out = jax.block_until_ready(mix_forward(x, x_deep, params))
    ref = jax.block_until_ready(mix_reference(x, x_deep, params))
    np.testing.assert_allclose(np.asarray(out), np.asarray(ref), rtol=1e-4, atol=1e-4)
    print("KERNEL_OK")
</pallas_src>

<mosaic_0001>
module attributes {stable_mosaic.version = 11 : i64} {
  func.func @_mix_kernel(%arg0: i32, %arg1: memref<1x10x10x8xf32, #tpu.memory_space<vmem>>, %arg2: memref<1x2x2x10x10x8xf32, #tpu.memory_space<vmem>>, %arg3: memref<200x32xf32, #tpu.memory_space<vmem>>, %arg4: memref<1x32xf32, #tpu.memory_space<vmem>>, %arg5: memref<1x32xf32, #tpu.memory_space<vmem>>, %arg6: memref<1x8x8x32xf32, #tpu.memory_space<vmem>>) attributes {dimension_semantics = [#tpu.dimension_semantics<parallel>], iteration_bounds = array<i64: 2>, scalar_prefetch = 0 : i64, scratch_operands = 0 : i64, tpu.core_type = #tpu.core_type<tc>, window_params = [{transform_indices = @transform_0, window_bounds = array<i64: 1, 10, 10, 8>}, {transform_indices = @transform_1, window_bounds = array<i64: 1, 2, 2, 10, 10, 8>}, {pipeline_mode = #tpu.pipeline_mode<synchronous>, transform_indices = @transform_2, window_bounds = array<i64: 200, 32>}, {pipeline_mode = #tpu.pipeline_mode<synchronous>, transform_indices = @transform_3, window_bounds = array<i64: 1, 32>}, {pipeline_mode = #tpu.pipeline_mode<synchronous>, transform_indices = @transform_4, window_bounds = array<i64: 1, 32>}, {transform_indices = @transform_5, window_bounds = array<i64: 1, 8, 8, 32>}]} {
    %c0 = arith.constant 0 : index
    %c0_0 = arith.constant 0 : index
    %c0_1 = arith.constant 0 : index
    %c0_2 = arith.constant 0 : index
    %0 = vector.load %arg1[%c0, %c0_0, %c0_1, %c0_2] : memref<1x10x10x8xf32, #tpu.memory_space<vmem>>, vector<1x8x8x8xf32>
    %1 = vector.shape_cast %0 : vector<1x8x8x8xf32> to vector<8x8x8xf32>
    %c0_3 = arith.constant 0 : index
    %c0_4 = arith.constant 0 : index
    %c1 = arith.constant 1 : index
    %c0_5 = arith.constant 0 : index
    %2 = vector.load %arg1[%c0_3, %c0_4, %c1, %c0_5] : memref<1x10x10x8xf32, #tpu.memory_space<vmem>>, vector<1x8x8x8xf32>
    %3 = vector.shape_cast %2 : vector<1x8x8x8xf32> to vector<8x8x8xf32>
    %c0_6 = arith.constant 0 : index
    %c0_7 = arith.constant 0 : index
    %c2 = arith.constant 2 : index
    %c0_8 = arith.constant 0 : index
    %4 = vector.load %arg1[%c0_6, %c0_7, %c2, %c0_8] : memref<1x10x10x8xf32, #tpu.memory_space<vmem>>, vector<1x8x8x8xf32>
    %5 = vector.shape_cast %4 : vector<1x8x8x8xf32> to vector<8x8x8xf32>
    %c0_9 = arith.constant 0 : index
    %c1_10 = arith.constant 1 : index
    %c0_11 = arith.constant 0 : index
    %c0_12 = arith.constant 0 : index
    %6 = vector.load %arg1[%c0_9, %c1_10, %c0_11, %c0_12] : memref<1x10x10x8xf32, #tpu.memory_space<vmem>>, vector<1x8x8x8xf32>
    %7 = vector.shape_cast %6 : vector<1x8x8x8xf32> to vector<8x8x8xf32>
    %c0_13 = arith.constant 0 : index
    %c1_14 = arith.constant 1 : index
    %c1_15 = arith.constant 1 : index
    %c0_16 = arith.constant 0 : index
    %8 = vector.load %arg1[%c0_13, %c1_14, %c1_15, %c0_16] : memref<1x10x10x8xf32, #tpu.memory_space<vmem>>, vector<1x8x8x8xf32>
    %9 = vector.shape_cast %8 : vector<1x8x8x8xf32> to vector<8x8x8xf32>
    %c0_17 = arith.constant 0 : index
    %c1_18 = arith.constant 1 : index
    %c2_19 = arith.constant 2 : index
    %c0_20 = arith.constant 0 : index
    %10 = vector.load %arg1[%c0_17, %c1_18, %c2_19, %c0_20] : memref<1x10x10x8xf32, #tpu.memory_space<vmem>>, vector<1x8x8x8xf32>
    %11 = vector.shape_cast %10 : vector<1x8x8x8xf32> to vector<8x8x8xf32>
    %c0_21 = arith.constant 0 : index
    %c2_22 = arith.constant 2 : index
    %c0_23 = arith.constant 0 : index
    %c0_24 = arith.constant 0 : index
    %12 = vector.load %arg1[%c0_21, %c2_22, %c0_23, %c0_24] : memref<1x10x10x8xf32, #tpu.memory_space<vmem>>, vector<1x8x8x8xf32>
    %13 = vector.shape_cast %12 : vector<1x8x8x8xf32> to vector<8x8x8xf32>
    %c0_25 = arith.constant 0 : index
    %c2_26 = arith.constant 2 : index
    %c1_27 = arith.constant 1 : index
    %c0_28 = arith.constant 0 : index
    %14 = vector.load %arg1[%c0_25, %c2_26, %c1_27, %c0_28] : memref<1x10x10x8xf32, #tpu.memory_space<vmem>>, vector<1x8x8x8xf32>
    %15 = vector.shape_cast %14 : vector<1x8x8x8xf32> to vector<8x8x8xf32>
    %c0_29 = arith.constant 0 : index
    %c2_30 = arith.constant 2 : index
    %c2_31 = arith.constant 2 : index
    %c0_32 = arith.constant 0 : index
    %16 = vector.load %arg1[%c0_29, %c2_30, %c2_31, %c0_32] : memref<1x10x10x8xf32, #tpu.memory_space<vmem>>, vector<1x8x8x8xf32>
    %17 = vector.shape_cast %16 : vector<1x8x8x8xf32> to vector<8x8x8xf32>
    %c0_33 = arith.constant 0 : index
    %c1_34 = arith.constant 1 : index
    %c1_35 = arith.constant 1 : index
    %c0_36 = arith.constant 0 : index
    %c0_37 = arith.constant 0 : index
    %c0_38 = arith.constant 0 : index
    %18 = vector.load %arg2[%c0_33, %c1_34, %c1_35, %c0_36, %c0_37, %c0_38] : memref<1x2x2x10x10x8xf32, #tpu.memory_space<vmem>>, vector<1x1x1x8x8x8xf32>
    %19 = vector.shape_cast %18 : vector<1x1x1x8x8x8xf32> to vector<8x8x8xf32>
    %c0_39 = arith.constant 0 : index
    %c1_40 = arith.constant 1 : index
    %c0_41 = arith.constant 0 : index
    %c0_42 = arith.constant 0 : index
    %c1_43 = arith.constant 1 : index
    %c0_44 = arith.constant 0 : index
    %20 = vector.load %arg2[%c0_39, %c1_40, %c0_41, %c0_42, %c1_43, %c0_44] : memref<1x2x2x10x10x8xf32, #tpu.memory_space<vmem>>, vector<1x1x1x8x8x8xf32>
    %21 = vector.shape_cast %20 : vector<1x1x1x8x8x8xf32> to vector<8x8x8xf32>
    %c0_45 = arith.constant 0 : index
    %c1_46 = arith.constant 1 : index
    %c1_47 = arith.constant 1 : index
    %c0_48 = arith.constant 0 : index
    %c1_49 = arith.constant 1 : index
    %c0_50 = arith.constant 0 : index
    %22 = vector.load %arg2[%c0_45, %c1_46, %c1_47, %c0_48, %c1_49, %c0_50] : memref<1x2x2x10x10x8xf32, #tpu.memory_space<vmem>>, vector<1x1x1x8x8x8xf32>
    %23 = vector.shape_cast %22 : vector<1x1x1x8x8x8xf32> to vector<8x8x8xf32>
    %c0_51 = arith.constant 0 : index
    %c1_52 = arith.constant 1 : index
    %c0_53 = arith.constant 0 : index
    %c0_54 = arith.constant 0 : index
    %c2_55 = arith.constant 2 : index
    %c0_56 = arith.constant 0 : index
    %24 = vector.load %arg2[%c0_51, %c1_52, %c0_53, %c0_54, %c2_55, %c0_56] : memref<1x2x2x10x10x8xf32, #tpu.memory_space<vmem>>, vector<1x1x1x8x8x8xf32>
    %25 = vector.shape_cast %24 : vector<1x1x1x8x8x8xf32> to vector<8x8x8xf32>
    %c0_57 = arith.constant 0 : index
    %c0_58 = arith.constant 0 : index
    %c1_59 = arith.constant 1 : index
    %c1_60 = arith.constant 1 : index
    %c0_61 = arith.constant 0 : index
    %c0_62 = arith.constant 0 : index
    %26 = vector.load %arg2[%c0_57, %c0_58, %c1_59, %c1_60, %c0_61, %c0_62] : memref<1x2x2x10x10x8xf32, #tpu.memory_space<vmem>>, vector<1x1x1x8x8x8xf32>
    %27 = vector.shape_cast %26 : vector<1x1x1x8x8x8xf32> to vector<8x8x8xf32>
    %c0_63 = arith.constant 0 : index
    %c0_64 = arith.constant 0 : index
    %c0_65 = arith.constant 0 : index
    %c1_66 = arith.constant 1 : index
    %c1_67 = arith.constant 1 : index
    %c0_68 = arith.constant 0 : index
    %28 = vector.load %arg2[%c0_63, %c0_64, %c0_65, %c1_66, %c1_67, %c0_68] : memref<1x2x2x10x10x8xf32, #tpu.memory_space<vmem>>, vector<1x1x1x8x8x8xf32>
    %29 = vector.shape_cast %28 : vector<1x1x1x8x8x8xf32> to vector<8x8x8xf32>
    %c0_69 = arith.constant 0 : index
    %c0_70 = arith.constant 0 : index
    %c1_71 = arith.constant 1 : index
    %c1_72 = arith.constant 1 : index
    %c1_73 = arith.constant 1 : index
    %c0_74 = arith.constant 0 : index
    %30 = vector.load %arg2[%c0_69, %c0_70, %c1_71, %c1_72, %c1_73, %c0_74] : memref<1x2x2x10x10x8xf32, #tpu.memory_space<vmem>>, vector<1x1x1x8x8x8xf32>
    %31 = vector.shape_cast %30 : vector<1x1x1x8x8x8xf32> to vector<8x8x8xf32>
    %c0_75 = arith.constant 0 : index
    %c0_76 = arith.constant 0 : index
    %c0_77 = arith.constant 0 : index
    %c1_78 = arith.constant 1 : index
    %c2_79 = arith.constant 2 : index
    %c0_80 = arith.constant 0 : index
    %32 = vector.load %arg2[%c0_75, %c0_76, %c0_77, %c1_78, %c2_79, %c0_80] : memref<1x2x2x10x10x8xf32, #tpu.memory_space<vmem>>, vector<1x1x1x8x8x8xf32>
    %33 = vector.shape_cast %32 : vector<1x1x1x8x8x8xf32> to vector<8x8x8xf32>
    %c0_81 = arith.constant 0 : index
    %c1_82 = arith.constant 1 : index
    %c1_83 = arith.constant 1 : index
    %c1_84 = arith.constant 1 : index
    %c0_85 = arith.constant 0 : index
    %c0_86 = arith.constant 0 : index
    %34 = vector.load %arg2[%c0_81, %c1_82, %c1_83, %c1_84, %c0_85, %c0_86] : memref<1x2x2x10x10x8xf32, #tpu.memory_space<vmem>>, vector<1x1x1x8x8x8xf32>
    %35 = vector.shape_cast %34 : vector<1x1x1x8x8x8xf32> to vector<8x8x8xf32>
    %c0_87 = arith.constant 0 : index
    %c1_88 = arith.constant 1 : index
    %c0_89 = arith.constant 0 : index
    %c1_90 = arith.constant 1 : index
    %c1_91 = arith.constant 1 : index
    %c0_92 = arith.constant 0 : index
    %36 = vector.load %arg2[%c0_87, %c1_88, %c0_89, %c1_90, %c1_91, %c0_92] : memref<1x2x2x10x10x8xf32, #tpu.memory_space<vmem>>, vector<1x1x1x8x8x8xf32>
    %37 = vector.shape_cast %36 : vector<1x1x1x8x8x8xf32> to vector<8x8x8xf32>
    %c0_93 = arith.constant 0 : index
    %c1_94 = arith.constant 1 : index
    %c1_95 = arith.constant 1 : index
    %c1_96 = arith.constant 1 : index
    %c1_97 = arith.constant 1 : index
    %c0_98 = arith.constant 0 : index
    %38 = vector.load %arg2[%c0_93, %c1_94, %c1_95, %c1_96, %c1_97, %c0_98] : memref<1x2x2x10x10x8xf32, #tpu.memory_space<vmem>>, vector<1x1x1x8x8x8xf32>
    %39 = vector.shape_cast %38 : vector<1x1x1x8x8x8xf32> to vector<8x8x8xf32>
    %c0_99 = arith.constant 0 : index
    %c1_100 = arith.constant 1 : index
    %c0_101 = arith.constant 0 : index
    %c1_102 = arith.constant 1 : index
    %c2_103 = arith.constant 2 : index
    %c0_104 = arith.constant 0 : index
    %40 = vector.load %arg2[%c0_99, %c1_100, %c0_101, %c1_102, %c2_103, %c0_104] : memref<1x2x2x10x10x8xf32, #tpu.memory_space<vmem>>, vector<1x1x1x8x8x8xf32>
    %41 = vector.shape_cast %40 : vector<1x1x1x8x8x8xf32> to vector<8x8x8xf32>
    %c0_105 = arith.constant 0 : index
    %c0_106 = arith.constant 0 : index
    %c1_107 = arith.constant 1 : index
    %c2_108 = arith.constant 2 : index
    %c0_109 = arith.constant 0 : index
    %c0_110 = arith.constant 0 : index
    %42 = vector.load %arg2[%c0_105, %c0_106, %c1_107, %c2_108, %c0_109, %c0_110] : memref<1x2x2x10x10x8xf32, #tpu.memory_space<vmem>>, vector<1x1x1x8x8x8xf32>
    %43 = vector.shape_cast %42 : vector<1x1x1x8x8x8xf32> to vector<8x8x8xf32>
    %c0_111 = arith.constant 0 : index
    %c0_112 = arith.constant 0 : index
    %c0_113 = arith.constant 0 : index
    %c2_114 = arith.constant 2 : index
    %c1_115 = arith.constant 1 : index
    %c0_116 = arith.constant 0 : index
    %44 = vector.load %arg2[%c0_111, %c0_112, %c0_113, %c2_114, %c1_115, %c0_116] : memref<1x2x2x10x10x8xf32, #tpu.memory_space<vmem>>, vector<1x1x1x8x8x8xf32>
    %45 = vector.shape_cast %44 : vector<1x1x1x8x8x8xf32> to vector<8x8x8xf32>
    %c0_117 = arith.constant 0 : index
    %c0_118 = arith.constant 0 : index
    %c1_119 = arith.constant 1 : index
    %c2_120 = arith.constant 2 : index
    %c1_121 = arith.constant 1 : index
    %c0_122 = arith.constant 0 : index
    %46 = vector.load %arg2[%c0_117, %c0_118, %c1_119, %c2_120, %c1_121, %c0_122] : memref<1x2x2x10x10x8xf32, #tpu.memory_space<vmem>>, vector<1x1x1x8x8x8xf32>
    %47 = vector.shape_cast %46 : vector<1x1x1x8x8x8xf32> to vector<8x8x8xf32>
    %c0_123 = arith.constant 0 : index
    %c0_124 = arith.constant 0 : index
    %c0_125 = arith.constant 0 : index
    %c2_126 = arith.constant 2 : index
    %c2_127 = arith.constant 2 : index
    %c0_128 = arith.constant 0 : index
    %48 = vector.load %arg2[%c0_123, %c0_124, %c0_125, %c2_126, %c2_127, %c0_128] : memref<1x2x2x10x10x8xf32, #tpu.memory_space<vmem>>, vector<1x1x1x8x8x8xf32>
    %49 = vector.shape_cast %48 : vector<1x1x1x8x8x8xf32> to vector<8x8x8xf32>
    %50 = tpu.concatenate %1, %3, %5, %7, %9, %11, %13, %15, %17, %19, %21, %23, %25, %27, %29, %31 in 2 : vector<8x8x8xf32>, vector<8x8x8xf32>, vector<8x8x8xf32>, vector<8x8x8xf32>, vector<8x8x8xf32>, vector<8x8x8xf32>, vector<8x8x8xf32>, vector<8x8x8xf32>, vector<8x8x8xf32>, vector<8x8x8xf32>, vector<8x8x8xf32>, vector<8x8x8xf32>, vector<8x8x8xf32>, vector<8x8x8xf32>, vector<8x8x8xf32>, vector<8x8x8xf32> -> vector<8x8x128xf32>
    %51 = tpu.concatenate %33, %35, %37, %39, %41, %43, %45, %47, %49 in 2 : vector<8x8x8xf32>, vector<8x8x8xf32>, vector<8x8x8xf32>, vector<8x8x8xf32>, vector<8x8x8xf32>, vector<8x8x8xf32>, vector<8x8x8xf32>, vector<8x8x8xf32>, vector<8x8x8xf32> -> vector<8x8x72xf32>
    %52 = tpu.concatenate %50, %51 in 2 : vector<8x8x128xf32>, vector<8x8x72xf32> -> vector<8x8x200xf32>
    %53 = vector.shape_cast %52 : vector<8x8x200xf32> to vector<64x200xf32>
    %c0_129 = arith.constant 0 : index
    %c0_130 = arith.constant 0 : index
    %54 = vector.load %arg3[%c0_129, %c0_130] : memref<200x32xf32, #tpu.memory_space<vmem>>, vector<200x32xf32>
    %cst = arith.constant dense<0.000000e+00> : vector<64x32xf32>
    %55 = tpu.matmul %53, %54, %cst {dimension_numbers = #tpu.dot_dimension_numbers<[1], [0], [0], [1], [0, 0, 1, 1], [], []>} : vector<64x200xf32>, vector<200x32xf32>, vector<64x32xf32> -> vector<64x32xf32>
    %c0_131 = arith.constant 0 : index
    %c0_132 = arith.constant 0 : index
    %56 = vector.load %arg4[%c0_131, %c0_132] : memref<1x32xf32, #tpu.memory_space<vmem>>, vector<1x32xf32>
    %57 = vector.broadcast %56 : vector<1x32xf32> to vector<64x32xf32>
    %58 = arith.addf %55, %57 : vector<64x32xf32>
    %cst_133 = arith.constant 0.000000e+00 : f32
    %59 = vector.broadcast %cst_133 : f32 to vector<64x32xf32>
    %60 = arith.cmpf oge, %58, %59 : vector<64x32xf32>
    %c0_134 = arith.constant 0 : index
    %c0_135 = arith.constant 0 : index
    %61 = vector.load %arg5[%c0_134, %c0_135] : memref<1x32xf32, #tpu.memory_space<vmem>>, vector<1x32xf32>
    %62 = vector.broadcast %61 : vector<1x32xf32> to vector<64x32xf32>
    %63 = arith.mulf %62, %58 : vector<64x32xf32>
    %64 = arith.select %60, %58, %63 : vector<64x32xi1>, vector<64x32xf32>
    %65 = vector.shape_cast %64 : vector<64x32xf32> to vector<1x8x8x32xf32>
    %c0_136 = arith.constant 0 : index
    %c0_137 = arith.constant 0 : index
    %c0_138 = arith.constant 0 : index
    %c0_139 = arith.constant 0 : index
    %66 = vector.load %arg6[%c0_136, %c0_137, %c0_138, %c0_139] : memref<1x8x8x32xf32, #tpu.memory_space<vmem>>, vector<1x8x8x32xf32>
    tpu.vector_store %arg6[%c0_136, %c0_137, %c0_138, %c0_139], %65 {strides = array<i32>} : memref<1x8x8x32xf32, #tpu.memory_space<vmem>>, vector<1x8x8x32xf32>,
    return
  }
  func.func @transform_0(%arg0: i32) -> (i32, i32, i32, i32) {
    %c0_i32 = arith.constant 0 : i32
    %c0_i32_0 = arith.constant 0 : i32
    %c0_i32_1 = arith.constant 0 : i32
    %c0_i32_2 = arith.constant 0 : i32
    return %arg0, %c0_i32, %c0_i32_0, %c0_i32_1 : i32, i32, i32, i32
  }
  func.func @transform_1(%arg0: i32) -> (i32, i32, i32, i32, i32, i32) {
    %c0_i32 = arith.constant 0 : i32
    %c0_i32_0 = arith.constant 0 : i32
    %c0_i32_1 = arith.constant 0 : i32
    %c0_i32_2 = arith.constant 0 : i32
    %c0_i32_3 = arith.constant 0 : i32
    %c0_i32_4 = arith.constant 0 : i32
    return %arg0, %c0_i32, %c0_i32_0, %c0_i32_1, %c0_i32_2, %c0_i32_3 : i32, i32, i32, i32, i32, i32
  }
  func.func @transform_2(%arg0: i32) -> (i32, i32) {
    %c0_i32 = arith.constant 0 : i32
    %c0_i32_0 = arith.constant 0 : i32
    %c0_i32_1 = arith.constant 0 : i32
    return %c0_i32, %c0_i32_0 : i32, i32
  }
  func.func @transform_3(%arg0: i32) -> (i32, i32) {
    %c0_i32 = arith.constant 0 : i32
    %c0_i32_0 = arith.constant 0 : i32
    %c0_i32_1 = arith.constant 0 : i32
    return %c0_i32, %c0_i32_0 : i32, i32
  }
  func.func @transform_4(%arg0: i32) -> (i32, i32) {
    %c0_i32 = arith.constant 0 : i32
    %c0_i32_0 = arith.constant 0 : i32
    %c0_i32_1 = arith.constant 0 : i32
    return %c0_i32, %c0_i32_0 : i32, i32
  }
  func.func @transform_5(%arg0: i32) -> (i32, i32, i32, i32) {
    %c0_i32 = arith.constant 0 : i32
    %c0_i32_0 = arith.constant 0 : i32
    %c0_i32_1 = arith.constant 0 : i32
    %c0_i32_2 = arith.constant 0 : i32
    return %arg0, %c0_i32, %c0_i32_0, %c0_i32_1 : i32, i32, i32, i32
  }
}

</mosaic_0001>

<llo_original>
// kernel: tpu_custom_call.1
$region0: #{tpu_custom_call.1}
  #allocation0 [shape = 'u32[]', space=smem, size = 0x4, offset = 0x4, fixed_abs, tag = 'smem constant byte address 0x4 - core index']
  #allocation1 [shape = 'u32[144,128]{1,0:T(1,128)}', space=vmem, size = 0x12000, scoped, tag = 'internal scratch']
  %s0 = inlined_call_operand.vmem [shape: f32[2,10,10,8], index: 0, kind: input, shape index: {}]
  %s1 = inlined_call_operand.vmem [shape: f32[2,2,2,10,10,8], index: 1, kind: input, shape index: {}]
  %s2 = inlined_call_operand.vmem [shape: f32[200,32], index: 2, kind: input, shape index: {}]
  %s3 = inlined_call_operand.vmem [shape: f32[1,32], index: 3, kind: input, shape index: {}]
  %s4 = inlined_call_operand.vmem [shape: f32[1,32], index: 4, kind: input, shape index: {}]
  %s5 = inlined_call_operand.hbm [shape: f32[2,8,8,32], index: 5, kind: output, shape index: {}]
  %s6 = sld [smem:[#allocation0]]
  $region53: #{tpu_custom_call.1} parent=0
    _
  %s8 = ssub.s32 1, %s6
  %s9 = scalar_select 0, %s8, %s6
  $region1: #{tpu_custom_call.1} parent=0
    #allocation2 [shape = 'u8[65536]{0}', space=vmem, size = 0x10000, scoped, tag = 'output window, operand 0']
    #allocation3 [shape = 's32[2]{0}', space=sflag, size = 0x8, scoped, tag = 'scoped memory for tpu_custom_call.1']
    %10 = vsyncpa [#allocation3], 0
    %s11 = scalar_lea.sflag [#allocation3], 1
    %12 = vsyncpa %s11, 0
    loop: start=0, step=1, limit=4
    $region2: #{tpu_custom_call.1} parent=1 // loop_pre_header
      _
    $region3: #{tpu_custom_call.1} parent=1 // loop_header
      %s14 = sphi 0, %s18
      %p15 = scmp.ge.s32.totalorder %s14, 4
      %s24 = sphi 0, %s26
      %s27 = sphi 0, %s24
      %s28 = sphi 0, %s27
      %s44 = sphi 0, %s28
      %s50 = sphi 0, %s52
      %s53 = sphi 0, %s50
      %s54 = sphi 0, %s53
      %s70 = sphi 0, %s54
      %s74 = sphi 0, %s74
      %s76 = sphi 0, %s74
      %s77 = sphi 0, %s76
      %s91 = sphi 0, %s77
      %s95 = sphi 0, %s95
      %s97 = sphi 0, %s95
      %s98 = sphi 0, %s97
      %s112 = sphi 0, %s98
      %s116 = sphi 0, %s116
      %s118 = sphi 0, %s116
      %s119 = sphi 0, %s118
      %s133 = sphi 0, %s119
      %s139 = sphi 0, %s141
      %s142 = sphi 0, %s139
      %s143 = sphi 0, %s142
      %s159 = sphi 0, %s143
    $region4: #{tpu_custom_call.1} parent=1 // loop_header_branch
      %17 = sbr.rel (%p15) target = $region8
    $region5: #{tpu_custom_call.1} parent=1 // loop_body
      %s19 = ssub.s32 %s14, 1
      %s20 = ssub.s32 %s14, 2
      %s21 = sadd.s32 %s14, 1
      %s22 = ssub.s32 %s14, %s21
      %p23 = scmp.eq.s32.totalorder %s22, 0
      %s25 = sadd.s32 %s24, 1
      %s26 = scalar_select %p23, %s24, %s25
      %p29 = pneg %p23
      %p30 = scmp.eq.s32.totalorder %s14, 1
      %p31 = por %p29, %p30
      %p32 = scmp.ne.s32.totalorder %s24, %s27
      %p33 = scmp.eq.s32.totalorder %s14, 0
      %p34 = por %p32, %p33
      %p35 = scmp.ne.s32.totalorder %s24, %s27
      %p36 = scmp.eq.s32.totalorder %s19, 1
      %p37 = por %p35, %p36
      %p38 = scmp.ne.s32.totalorder %s27, %s28
      %p39 = scmp.eq.s32.totalorder %s19, 0
      %p40 = por %p38, %p39
      %p41 = scmp.ne.s32.totalorder %s27, %s28
      %p42 = scmp.eq.s32.totalorder %s20, 1
      %p43 = por %p41, %p42
      %p45 = scmp.ne.s32.totalorder %s28, %s44
      %p46 = scmp.eq.s32.totalorder %s20, 0
      %p47 = por %p45, %p46
      %s48 = ssub.s32 %s14, %s21
      %p49 = scmp.eq.s32.totalorder %s48, 0
      %s51 = sadd.s32 %s50, 1
      %s52 = scalar_select %p49, %s50, %s51
      %p55 = pneg %p49
      %p56 = scmp.eq.s32.totalorder %s14, 1
      %p57 = por %p55, %p56
      %p58 = scmp.ne.s32.totalorder %s50, %s53
      %p59 = scmp.eq.s32.totalorder %s14, 0
      %p60 = por %p58, %p59
      %p61 = scmp.ne.s32.totalorder %s50, %s53
      %p62 = scmp.eq.s32.totalorder %s19, 1
      %p63 = por %p61, %p62
      %p64 = scmp.ne.s32.totalorder %s53, %s54
      %p65 = scmp.eq.s32.totalorder %s19, 0
      %p66 = por %p64, %p65
      %p67 = scmp.ne.s32.totalorder %s53, %s54
      %p68 = scmp.eq.s32.totalorder %s20, 1
      %p69 = por %p67, %p68
      %p71 = scmp.ne.s32.totalorder %s54, %s70
      %p72 = scmp.eq.s32.totalorder %s20, 0
      %p73 = por %p71, %p72
      %s75 = sadd.s32 %s74, 1
      %p78 = scmp.eq.s32.totalorder %s14, 1
      %p79 = scmp.ne.s32.totalorder %s74, %s76
      %p80 = scmp.eq.s32.totalorder %s14, 0
      %p81 = por %p79, %p80
      %p82 = scmp.ne.s32.totalorder %s74, %s76
      %p83 = scmp.eq.s32.totalorder %s19, 1
      %p84 = por %p82, %p83
      %p85 = scmp.ne.s32.totalorder %s76, %s77
      %p86 = scmp.eq.s32.totalorder %s19, 0
      %p87 = por %p85, %p86
      %p88 = scmp.ne.s32.totalorder %s76, %s77
      %p89 = scmp.eq.s32.totalorder %s20, 1
      %p90 = por %p88, %p89
      %p92 = scmp.ne.s32.totalorder %s77, %s91
      %p93 = scmp.eq.s32.totalorder %s20, 0
      %p94 = por %p92, %p93
      %s96 = sadd.s32 %s95, 1
      %p99 = scmp.eq.s32.totalorder %s14, 1
      %p100 = scmp.ne.s32.totalorder %s95, %s97
      %p101 = scmp.eq.s32.totalorder %s14, 0
      %p102 = por %p100, %p101
      %p103 = scmp.ne.s32.totalorder %s95, %s97
      %p104 = scmp.eq.s32.totalorder %s19, 1
      %p105 = por %p103, %p104
      %p106 = scmp.ne.s32.totalorder %s97, %s98
      %p107 = scmp.eq.s32.totalorder %s19, 0
      %p108 = por %p106, %p107
      %p109 = scmp.ne.s32.totalorder %s97, %s98
      %p110 = scmp.eq.s32.totalorder %s20, 1
      %p111 = por %p109, %p110
      %p113 = scmp.ne.s32.totalorder %s98, %s112
      %p114 = scmp.eq.s32.totalorder %s20, 0
      %p115 = por %p113, %p114
      %s117 = sadd.s32 %s116, 1
      %p120 = scmp.eq.s32.totalorder %s14, 1
      %p121 = scmp.ne.s32.totalorder %s116, %s118
      %p122 = scmp.eq.s32.totalorder %s14, 0
      %p123 = por %p121, %p122
      %p124 = scmp.ne.s32.totalorder %s116, %s118
      %p125 = scmp.eq.s32.totalorder %s19, 1
      %p126 = por %p124, %p125
      %p127 = scmp.ne.s32.totalorder %s118, %s119
      %p128 = scmp.eq.s32.totalorder %s19, 0
      %p129 = por %p127, %p128
      %p130 = scmp.ne.s32.totalorder %s118, %s119
      %p131 = scmp.eq.s32.totalorder %s20, 1
      %p132 = por %p130, %p131
      %p134 = scmp.ne.s32.totalorder %s119, %s133
      %p135 = scmp.eq.s32.totalorder %s20, 0
      %p136 = por %p134, %p135
      %s137 = ssub.s32 %s14, %s21
      %p138 = scmp.eq.s32.totalorder %s137, 0
      %s140 = sadd.s32 %s139, 1
      %s141 = scalar_select %p138, %s139, %s140
      %p144 = pneg %p138
      %p145 = scmp.eq.s32.totalorder %s14, 1
      %p146 = por %p144, %p145
      %p147 = scmp.ne.s32.totalorder %s139, %s142
      %p148 = scmp.eq.s32.totalorder %s14, 0
      %p149 = por %p147, %p148
      %p150 = scmp.ne.s32.totalorder %s139, %s142
      %p151 = scmp.eq.s32.totalorder %s19, 1
      %p152 = por %p150, %p151
      %p153 = scmp.ne.s32.totalorder %s142, %s143
      %p154 = scmp.eq.s32.totalorder %s19, 0
      %p155 = por %p153, %p154
      %p156 = scmp.ne.s32.totalorder %s142, %s143
      %p157 = scmp.eq.s32.totalorder %s20, 1
      %p158 = por %p156, %p157
      %p160 = scmp.ne.s32.totalorder %s143, %s159
      %p161 = scmp.eq.s32.totalorder %s20, 0
      %p162 = por %p160, %p161
      %p163 = scmp.le.s32.totalorder 1, %s14
      %p164 = scmp.lt.s32.totalorder %s14, 3
      %p165 = pnand %p163, %p164
      %p166 = pneg %p165
      // Predicated region
      $region9: #{tpu_custom_call.1} parent=5 // pred_check
        _
      $region10: #{tpu_custom_call.1} parent=5 // pred_check_branch
        %168 = sbr.rel (%p165) target = $region12
      $region11: #{tpu_custom_call.1} parent=5 // pred_region
        %s169 = ssub.s32 %s14, 1
        // Predicated region
        $region13: #{tpu_custom_call.1} parent=11 // pred_check
          %p170 = pneg %p87
        $region14: #{tpu_custom_call.1} parent=11 // pred_check_branch
          %172 = sbr.rel (%p170) target = $region16
        $region15: #{tpu_custom_call.1} parent=11 // pred_region
          _
        $region16: #{tpu_custom_call.1} parent=11 // pred_fallthru
          _
        // Predicated region
        $region17: #{tpu_custom_call.1} parent=11 // pred_check
          %p173 = pneg %p108
        $region18: #{tpu_custom_call.1} parent=11 // pred_check_branch
          %175 = sbr.rel (%p173) target = $region20
        $region19: #{tpu_custom_call.1} parent=11 // pred_region
          _
        $region20: #{tpu_custom_call.1} parent=11 // pred_fallthru
          _
        // Predicated region
        $region21: #{tpu_custom_call.1} parent=11 // pred_check
          %p176 = pneg %p129
        $region22: #{tpu_custom_call.1} parent=11 // pred_check_branch
          %178 = sbr.rel (%p176) target = $region24
        $region23: #{tpu_custom_call.1} parent=11 // pred_region
          _
        $region24: #{tpu_custom_call.1} parent=11 // pred_fallthru
          _
      $region12: #{tpu_custom_call.1} parent=5 // pred_fallthru
        _
      %p179 = scmp.lt.s32.totalorder %s14, 2
      // Predicated region
      $region25: #{tpu_custom_call.1} parent=5 // pred_check
        %p180 = pneg %p179
      $region26: #{tpu_custom_call.1} parent=5 // pred_check_branch
        %182 = sbr.rel (%p180) target = $region28
      $region27: #{tpu_custom_call.1} parent=5 // pred_region
        // Predicated region
        $region29: #{tpu_custom_call.1} parent=27 // pred_check
          %p183 = pneg %p34
        $region30: #{tpu_custom_call.1} parent=27 // pred_check_branch
          %185 = sbr.rel (%p183) target = $region32
        $region31: #{tpu_custom_call.1} parent=27 // pred_region
          %p186 = scmp.lt.s32.totalorder %s14, 1
          %s187 = scalar_select %p186, %s14, 1
          %s188 = smul.addr %s187, 20
          %s189 = smul.addr %s188, 8
          %s190 = scalar_lea.vmem %s0, %s189
        $region32: #{tpu_custom_call.1} parent=27 // pred_fallthru
          _
        // Predicated region
        $region33: #{tpu_custom_call.1} parent=27 // pred_check
          %p191 = pneg %p60
        $region34: #{tpu_custom_call.1} parent=27 // pred_check_branch
          %193 = sbr.rel (%p191) target = $region36
        $region35: #{tpu_custom_call.1} parent=27 // pred_region
          %p194 = scmp.lt.s32.totalorder %s14, 1
          %s195 = scalar_select %p194, %s14, 1
          %s196 = smul.addr %s195, 80
          %s197 = smul.addr %s196, 8
          %s198 = scalar_lea.vmem %s1, %s197
        $region36: #{tpu_custom_call.1} parent=27 // pred_fallthru
          _
      $region28: #{tpu_custom_call.1} parent=5 // pred_fallthru
        _
      %p199 = scmp.le.s32.totalorder 1, %s14
      %p200 = scmp.lt.s32.totalorder %s14, 3
      %p201 = pnand %p199, %p200
      %p202 = pneg %p201
      // Predicated region
      $region37: #{tpu_custom_call.1} parent=5 // pred_check
        _
      $region38: #{tpu_custom_call.1} parent=5 // pred_check_branch
        %204 = sbr.rel (%p201) target = $region40
      $region39: #{tpu_custom_call.1} parent=5 // pred_region
        %s205 = ssub.s32 %s14, 1
        %p206 = scmp.lt.s32.totalorder %s19, 1
        %s207 = scalar_select %p206, %s19, 1
        %s208 = smul.addr %s207, 20
        %s209 = smul.addr %s208, 8
        %s210 = scalar_lea.vmem %s0, %s209
        %p211 = pneg %p40
        %p212 = pneg %p37
        %p213 = scmp.lt.s32.totalorder %s19, 1
        %s214 = scalar_select %p213, %s19, 1
        %s215 = smul.addr %s214, 80
        %s216 = smul.addr %s215, 8
        %s217 = scalar_lea.vmem %s1, %s216
        %p218 = pneg %p66
        %p219 = pneg %p63
        %p220 = pneg %p87
        %p221 = pneg %p84
        %p222 = pneg %p108
        %p223 = pneg %p105
        %p224 = pneg %p129
        %p225 = pneg %p126
        %p226 = pneg %p155
        %p227 = pneg %p152
        %s228 = sand.u32 %s142, 1
        %s229 = scalar_lea.sflag [#allocation3], %s228
        %s230 = sand.u32 %s142, 1
        %s231 = smul.addr %s230, 64
        %s232 = scalar_lea.vmem [#allocation2], %s231
        %p233 = scmp.lt.s32.totalorder %s19, 1
        %s234 = scalar_select %p233, %s19, 1
        %s235 = smul.addr %s234, 20
        %s236 = smul.addr %s235, 8
        %s237 = scalar_lea.vmem %s0, %s236
        %p238 = scmp.lt.s32.totalorder %s19, 1
        %s239 = scalar_select %p238, %s19, 1
        %s240 = smul.addr %s239, 80
        %s241 = smul.addr %s240, 8
        %s242 = scalar_lea.vmem %s1, %s241
        %v243 = vld [vmem:[%s237] sm:$0xff]
        %v244 = vld [vmem:[%s237 + $0x10] sm:$0xff]
        %v245 = vld [vmem:[%s237 + $0x20] sm:$0xff]
        %v246 = vld [vmem:[%s237 + $0x30] sm:$0xff]
        %v247 = vld [vmem:[%s237 + $0x40] sm:$0xff]
        %v248 = vld [vmem:[%s237 + $0x50] sm:$0xff]
        %v249 = vld [vmem:[%s237 + $0x60] sm:$0xff]
        %v250 = vld [vmem:[%s237 + $0x70] sm:$0xff]
        %v251 = vld [vmem:[%s237 + $0x1] sm:$0xff]
        %v252 = vld [vmem:[%s237 + $0x11] sm:$0xff]
        %v253 = vld [vmem:[%s237 + $0x21] sm:$0xff]
        %v254 = vld [vmem:[%s237 + $0x31] sm:$0xff]
        %v255 = vld [vmem:[%s237 + $0x41] sm:$0xff]
        %v256 = vld [vmem:[%s237 + $0x51] sm:$0xff]
        %v257 = vld [vmem:[%s237 + $0x61] sm:$0xff]
        %v258 = vld [vmem:[%s237 + $0x71] sm:$0xff]
        %v259 = vld [vmem:[%s237 + $0x2] sm:$0xff]
        %v260 = vld [vmem:[%s237 + $0x12] sm:$0xff]
        %v261 = vld [vmem:[%s237 + $0x22] sm:$0xff]
        %v262 = vld [vmem:[%s237 + $0x32] sm:$0xff]
        %v263 = vld [vmem:[%s237 + $0x42] sm:$0xff]
        %v264 = vld [vmem:[%s237 + $0x52] sm:$0xff]
        %v265 = vld [vmem:[%s237 + $0x62] sm:$0xff]
        %v266 = vld [vmem:[%s237 + $0x72] sm:$0xff]
        %s267 = scalar_lea.vmem %s237, 16
        %v268 = vld [vmem:[%s267] sm:$0xff]
        %v269 = vld [vmem:[%s267 + $0x10] sm:$0xff]
        %v270 = vld [vmem:[%s267 + $0x20] sm:$0xff]
        %v271 = vld [vmem:[%s267 + $0x30] sm:$0xff]
        %v272 = vld [vmem:[%s267 + $0x40] sm:$0xff]
        %v273 = vld [vmem:[%s267 + $0x50] sm:$0xff]
        %v274 = vld [vmem:[%s267 + $0x60] sm:$0xff]
        %v275 = vld [vmem:[%s267 + $0x70] sm:$0xff]
        %v276 = vld [vmem:[%s267 + $0x1] sm:$0xff]
        %v277 = vld [vmem:[%s267 + $0x11] sm:$0xff]
        %v278 = vld [vmem:[%s267 + $0x21] sm:$0xff]
        %v279 = vld [vmem:[%s267 + $0x31] sm:$0xff]
        %v280 = vld [vmem:[%s267 + $0x41] sm:$0xff]
        %v281 = vld [vmem:[%s267 + $0x51] sm:$0xff]
        %v282 = vld [vmem:[%s267 + $0x61] sm:$0xff]
        %v283 = vld [vmem:[%s267 + $0x71] sm:$0xff]
        %v284 = vld [vmem:[%s267 + $0x2] sm:$0xff]
        %v285 = vld [vmem:[%s267 + $0x12] sm:$0xff]
        %v286 = vld [vmem:[%s267 + $0x22] sm:$0xff]
        %v287 = vld [vmem:[%s267 + $0x32] sm:$0xff]
        %v288 = vld [vmem:[%s267 + $0x42] sm:$0xff]
        %v289 = vld [vmem:[%s267 + $0x52] sm:$0xff]
        %v290 = vld [vmem:[%s267 + $0x62] sm:$0xff]
        %v291 = vld [vmem:[%s267 + $0x72] sm:$0xff]
        %s292 = scalar_lea.vmem %s237, 32
        %v293 = vld [vmem:[%s292] sm:$0xff]
        %v294 = vld [vmem:[%s292 + $0x10] sm:$0xff]
        %v295 = vld [vmem:[%s292 + $0x20] sm:$0xff]
        %v296 = vld [vmem:[%s292 + $0x30] sm:$0xff]
        %v297 = vld [vmem:[%s292 + $0x40] sm:$0xff]
        %v298 = vld [vmem:[%s292 + $0x50] sm:$0xff]
        %v299 = vld [vmem:[%s292 + $0x60] sm:$0xff]
        %v300 = vld [vmem:[%s292 + $0x70] sm:$0xff]
        %v301 = vld [vmem:[%s292 + $0x1] sm:$0xff]
        %v302 = vld [vmem:[%s292 + $0x11] sm:$0xff]
        %v303 = vld [vmem:[%s292 + $0x21] sm:$0xff]
        %v304 = vld [vmem:[%s292 + $0x31] sm:$0xff]
        %v305 = vld [vmem:[%s292 + $0x41] sm:$0xff]
        %v306 = vld [vmem:[%s292 + $0x51] sm:$0xff]
        %v307 = vld [vmem:[%s292 + $0x61] sm:$0xff]
        %v308 = vld [vmem:[%s292 + $0x71] sm:$0xff]
        %v309 = vld [vmem:[%s292 + $0x2] sm:$0xff]
        %v310 = vld [vmem:[%s292 + $0x12] sm:$0xff]
        %v311 = vld [vmem:[%s292 + $0x22] sm:$0xff]
        %v312 = vld [vmem:[%s292 + $0x32] sm:$0xff]
        %v313 = vld [vmem:[%s292 + $0x42] sm:$0xff]
        %v314 = vld [vmem:[%s292 + $0x52] sm:$0xff]
        %v315 = vld [vmem:[%s292 + $0x62] sm:$0xff]
        %v316 = vld [vmem:[%s292 + $0x72] sm:$0xff]
        %s317 = scalar_lea.vmem %s242, 480
        %v318 = vld [vmem:[%s317] sm:$0xff]
        %v319 = vld [vmem:[%s317 + $0x10] sm:$0xff]
        %v320 = vld [vmem:[%s317 + $0x20] sm:$0xff]
        %v321 = vld [vmem:[%s317 + $0x30] sm:$0xff]
        %v322 = vld [vmem:[%s317 + $0x40] sm:$0xff]
        %v323 = vld [vmem:[%s317 + $0x50] sm:$0xff]
        %v324 = vld [vmem:[%s317 + $0x60] sm:$0xff]
        %v325 = vld [vmem:[%s317 + $0x70] sm:$0xff]
        %s326 = scalar_lea.vmem %s242, 320
        %v327 = vld [vmem:[%s326 + $0x1] sm:$0xff]
        %v328 = vld [vmem:[%s326 + $0x11] sm:$0xff]
        %v329 = vld [vmem:[%s326 + $0x21] sm:$0xff]
        %v330 = vld [vmem:[%s326 + $0x31] sm:$0xff]
        %v331 = vld [vmem:[%s326 + $0x41] sm:$0xff]
        %v332 = vld [vmem:[%s326 + $0x51] sm:$0xff]
        %v333 = vld [vmem:[%s326 + $0x61] sm:$0xff]
        %v334 = vld [vmem:[%s326 + $0x71] sm:$0xff]
        %v335 = vld [vmem:[%s317 + $0x1] sm:$0xff]
        %v336 = vld [vmem:[%s317 + $0x11] sm:$0xff]
        %v337 = vld [vmem:[%s317 + $0x21] sm:$0xff]
        %v338 = vld [vmem:[%s317 + $0x31] sm:$0xff]
        %v339 = vld [vmem:[%s317 + $0x41] sm:$0xff]
        %v340 = vld [vmem:[%s317 + $0x51] sm:$0xff]
        %v341 = vld [vmem:[%s317 + $0x61] sm:$0xff]
        %v342 = vld [vmem:[%s317 + $0x71] sm:$0xff]
        %v343 = vld [vmem:[%s326 + $0x2] sm:$0xff]
        %v344 = vld [vmem:[%s326 + $0x12] sm:$0xff]
        %v345 = vld [vmem:[%s326 + $0x22] sm:$0xff]
        %v346 = vld [vmem:[%s326 + $0x32] sm:$0xff]
        %v347 = vld [vmem:[%s326 + $0x42] sm:$0xff]
        %v348 = vld [vmem:[%s326 + $0x52] sm:$0xff]
        %v349 = vld [vmem:[%s326 + $0x62] sm:$0xff]
        %v350 = vld [vmem:[%s326 + $0x72] sm:$0xff]
        %s351 = scalar_lea.vmem %s242, 176
        %v352 = vld [vmem:[%s351] sm:$0xff]
        %v353 = vld [vmem:[%s351 + $0x10] sm:$0xff]
        %v354 = vld [vmem:[%s351 + $0x20] sm:$0xff]
        %v355 = vld [vmem:[%s351 + $0x30] sm:$0xff]
        %v356 = vld [vmem:[%s351 + $0x40] sm:$0xff]
        %v357 = vld [vmem:[%s351 + $0x50] sm:$0xff]
        %v358 = vld [vmem:[%s351 + $0x60] sm:$0xff]
        %v359 = vld [vmem:[%s351 + $0x70] sm:$0xff]
        %s360 = scalar_lea.vmem %s242, 16
        %v361 = vld [vmem:[%s360 + $0x1] sm:$0xff]
        %v362 = vld [vmem:[%s360 + $0x11] sm:$0xff]
        %v363 = vld [vmem:[%s360 + $0x21] sm:$0xff]
        %v364 = vld [vmem:[%s360 + $0x31] sm:$0xff]
        %v365 = vld [vmem:[%s360 + $0x41] sm:$0xff]
        %v366 = vld [vmem:[%s360 + $0x51] sm:$0xff]
        %v367 = vld [vmem:[%s360 + $0x61] sm:$0xff]
        %v368 = vld [vmem:[%s360 + $0x71] sm:$0xff]
        %v369 = vld [vmem:[%s351 + $0x1] sm:$0xff]
        %v370 = vld [vmem:[%s351 + $0x11] sm:$0xff]
        %v371 = vld [vmem:[%s351 + $0x21] sm:$0xff]
        %v372 = vld [vmem:[%s351 + $0x31] sm:$0xff]
        %v373 = vld [vmem:[%s351 + $0x41] sm:$0xff]
        %v374 = vld [vmem:[%s351 + $0x51] sm:$0xff]
        %v375 = vld [vmem:[%s351 + $0x61] sm:$0xff]
        %v376 = vld [vmem:[%s351 + $0x71] sm:$0xff]
        %v377 = vld [vmem:[%s360 + $0x2] sm:$0xff]
        %v378 = vld [vmem:[%s360 + $0x12] sm:$0xff]
        %v379 = vld [vmem:[%s360 + $0x22] sm:$0xff]
        %v380 = vld [vmem:[%s360 + $0x32] sm:$0xff]
        %v381 = vld [vmem:[%s360 + $0x42] sm:$0xff]
        %v382 = vld [vmem:[%s360 + $0x52] sm:$0xff]
        %v383 = vld [vmem:[%s360 + $0x62] sm:$0xff]
        %v384 = vld [vmem:[%s360 + $0x72] sm:$0xff]
        %s385 = scalar_lea.vmem %s242, 496
        %v386 = vld [vmem:[%s385] sm:$0xff]
        %v387 = vld [vmem:[%s385 + $0x10] sm:$0xff]
        %v388 = vld [vmem:[%s385 + $0x20] sm:$0xff]
        %v389 = vld [vmem:[%s385 + $0x30] sm:$0xff]
        %v390 = vld [vmem:[%s385 + $0x40] sm:$0xff]
        %v391 = vld [vmem:[%s385 + $0x50] sm:$0xff]
        %v392 = vld [vmem:[%s385 + $0x60] sm:$0xff]
        %v393 = vld [vmem:[%s385 + $0x70] sm:$0xff]
        %s394 = scalar_lea.vmem %s242, 336
        %v395 = vld [vmem:[%s394 + $0x1] sm:$0xff]
        %v396 = vld [vmem:[%s394 + $0x11] sm:$0xff]
        %v397 = vld [vmem:[%s394 + $0x21] sm:$0xff]
        %v398 = vld [vmem:[%s394 + $0x31] sm:$0xff]
        %v399 = vld [vmem:[%s394 + $0x41] sm:$0xff]
        %v400 = vld [vmem:[%s394 + $0x51] sm:$0xff]
        %v401 = vld [vmem:[%s394 + $0x61] sm:$0xff]
        %v402 = vld [vmem:[%s394 + $0x71] sm:$0xff]
        %v403 = vld [vmem:[%s385 + $0x1] sm:$0xff]
        %v404 = vld [vmem:[%s385 + $0x11] sm:$0xff]
        %v405 = vld [vmem:[%s385 + $0x21] sm:$0xff]
        %v406 = vld [vmem:[%s385 + $0x31] sm:$0xff]
        %v407 = vld [vmem:[%s385 + $0x41] sm:$0xff]
        %v408 = vld [vmem:[%s385 + $0x51] sm:$0xff]
        %v409 = vld [vmem:[%s385 + $0x61] sm:$0xff]
        %v410 = vld [vmem:[%s385 + $0x71] sm:$0xff]
        %v411 = vld [vmem:[%s394 + $0x2] sm:$0xff]
        %v412 = vld [vmem:[%s394 + $0x12] sm:$0xff]
        %v413 = vld [vmem:[%s394 + $0x22] sm:$0xff]
        %v414 = vld [vmem:[%s394 + $0x32] sm:$0xff]
        %v415 = vld [vmem:[%s394 + $0x42] sm:$0xff]
        %v416 = vld [vmem:[%s394 + $0x52] sm:$0xff]
        %v417 = vld [vmem:[%s394 + $0x62] sm:$0xff]
        %v418 = vld [vmem:[%s394 + $0x72] sm:$0xff]
        %s419 = scalar_lea.vmem %s242, 192
        %v420 = vld [vmem:[%s419] sm:$0xff]
        %v421 = vld [vmem:[%s419 + $0x10] sm:$0xff]
        %v422 = vld [vmem:[%s419 + $0x20] sm:$0xff]
        %v423 = vld [vmem:[%s419 + $0x30] sm:$0xff]
        %v424 = vld [vmem:[%s419 + $0x40] sm:$0xff]
        %v425 = vld [vmem:[%s419 + $0x50] sm:$0xff]
        %v426 = vld [vmem:[%s419 + $0x60] sm:$0xff]
        %v427 = vld [vmem:[%s419 + $0x70] sm:$0xff]
        %s428 = scalar_lea.vmem %s242, 32
        %v429 = vld [vmem:[%s428 + $0x1] sm:$0xff]
        %v430 = vld [vmem:[%s428 + $0x11] sm:$0xff]
        %v431 = vld [vmem:[%s428 + $0x21] sm:$0xff]
        %v432 = vld [vmem:[%s428 + $0x31] sm:$0xff]
        %v433 = vld [vmem:[%s428 + $0x41] sm:$0xff]
        %v434 = vld [vmem:[%s428 + $0x51] sm:$0xff]
        %v435 = vld [vmem:[%s428 + $0x61] sm:$0xff]
        %v436 = vld [vmem:[%s428 + $0x71] sm:$0xff]
        %v437 = vld [vmem:[%s419 + $0x1] sm:$0xff]
        %v438 = vld [vmem:[%s419 + $0x11] sm:$0xff]
        %v439 = vld [vmem:[%s419 + $0x21] sm:$0xff]
        %v440 = vld [vmem:[%s419 + $0x31] sm:$0xff]
        %v441 = vld [vmem:[%s419 + $0x41] sm:$0xff]
        %v442 = vld [vmem:[%s419 + $0x51] sm:$0xff]
        %v443 = vld [vmem:[%s419 + $0x61] sm:$0xff]
        %v444 = vld [vmem:[%s419 + $0x71] sm:$0xff]
        %v445 = vld [vmem:[%s428 + $0x2] sm:$0xff]
        %v446 = vld [vmem:[%s428 + $0x12] sm:$0xff]
        %v447 = vld [vmem:[%s428 + $0x22] sm:$0xff]
        %v448 = vld [vmem:[%s428 + $0x32] sm:$0xff]
        %v449 = vld [vmem:[%s428 + $0x42] sm:$0xff]
        %v450 = vld [vmem:[%s428 + $0x52] sm:$0xff]
        %v451 = vld [vmem:[%s428 + $0x62] sm:$0xff]
        %v452 = vld [vmem:[%s428 + $0x72] sm:$0xff]
        %461 = vrot.lane.b32.xlu0 %v251, 8
        %v462 = vpop.permute.xlu0 %461
        %463 = vrot.lane.b32.xlu0 %v252, 8
        %v464 = vpop.permute.xlu0 %463
        %465 = vrot.lane.b32.xlu0 %v253, 8
        %v466 = vpop.permute.xlu0 %465
        %467 = vrot.lane.b32.xlu0 %v254, 8
        %v468 = vpop.permute.xlu0 %467
        %469 = vrot.lane.b32.xlu0 %v255, 8
        %v470 = vpop.permute.xlu0 %469
        %471 = vrot.lane.b32.xlu0 %v256, 8
        %v472 = vpop.permute.xlu0 %471
        %473 = vrot.lane.b32.xlu0 %v257, 8
        %v474 = vpop.permute.xlu0 %473
        %475 = vrot.lane.b32.xlu0 %v258, 8
        %v476 = vpop.permute.xlu0 %475
        %493 = vrot.lane.b32.xlu0 %v259, 16
        %v494 = vpop.permute.xlu0 %493
        %495 = vrot.lane.b32.xlu0 %v260, 16
        %v496 = vpop.permute.xlu0 %495
        %497 = vrot.lane.b32.xlu0 %v261, 16
        %v498 = vpop.permute.xlu0 %497
        %499 = vrot.lane.b32.xlu0 %v262, 16
        %v500 = vpop.permute.xlu0 %499
        %501 = vrot.lane.b32.xlu0 %v263, 16
        %v502 = vpop.permute.xlu0 %501
        %503 = vrot.lane.b32.xlu0 %v264, 16
        %v504 = vpop.permute.xlu0 %503
        %505 = vrot.lane.b32.xlu0 %v265, 16
        %v506 = vpop.permute.xlu0 %505
        %507 = vrot.lane.b32.xlu0 %v266, 16
        %v508 = vpop.permute.xlu0 %507
        %525 = vrot.lane.b32.xlu0 %v268, 24
        %v526 = vpop.permute.xlu0 %525
        %527 = vrot.lane.b32.xlu0 %v269, 24
        %v528 = vpop.permute.xlu0 %527
        %529 = vrot.lane.b32.xlu0 %v270, 24
        %v530 = vpop.permute.xlu0 %529
        %531 = vrot.lane.b32.xlu0 %v271, 24
        %v532 = vpop.permute.xlu0 %531
        %533 = vrot.lane.b32.xlu0 %v272, 24
        %v534 = vpop.permute.xlu0 %533
        %535 = vrot.lane.b32.xlu0 %v273, 24
        %v536 = vpop.permute.xlu0 %535
        %537 = vrot.lane.b32.xlu0 %v274, 24
        %v538 = vpop.permute.xlu0 %537
        %539 = vrot.lane.b32.xlu0 %v275, 24
        %v540 = vpop.permute.xlu0 %539
        %557 = vrot.lane.b32.xlu0 %v276, 32
        %v558 = vpop.permute.xlu0 %557
        %559 = vrot.lane.b32.xlu0 %v277, 32
        %v560 = vpop.permute.xlu0 %559
        %561 = vrot.lane.b32.xlu0 %v278, 32
        %v562 = vpop.permute.xlu0 %561
        %563 = vrot.lane.b32.xlu0 %v279, 32
        %v564 = vpop.permute.xlu0 %563
        %565 = vrot.lane.b32.xlu0 %v280, 32
        %v566 = vpop.permute.xlu0 %565
        %567 = vrot.lane.b32.xlu0 %v281, 32
        %v568 = vpop.permute.xlu0 %567
        %569 = vrot.lane.b32.xlu0 %v282, 32
        %v570 = vpop.permute.xlu0 %569
        %571 = vrot.lane.b32.xlu0 %v283, 32
        %v572 = vpop.permute.xlu0 %571
        %589 = vrot.lane.b32.xlu0 %v284, 40
        %v590 = vpop.permute.xlu0 %589
        %591 = vrot.lane.b32.xlu0 %v285, 40
        %v592 = vpop.permute.xlu0 %591
        %593 = vrot.lane.b32.xlu0 %v286, 40
        %v594 = vpop.permute.xlu0 %593
        %595 = vrot.lane.b32.xlu0 %v287, 40
        %v596 = vpop.permute.xlu0 %595
        %597 = vrot.lane.b32.xlu0 %v288, 40
        %v598 = vpop.permute.xlu0 %597
        %599 = vrot.lane.b32.xlu0 %v289, 40
        %v600 = vpop.permute.xlu0 %599
        %601 = vrot.lane.b32.xlu0 %v290, 40
        %v602 = vpop.permute.xlu0 %601
        %603 = vrot.lane.b32.xlu0 %v291, 40
        %v604 = vpop.permute.xlu0 %603
        %621 = vrot.lane.b32.xlu0 %v293, 48
        %v622 = vpop.permute.xlu0 %621
        %623 = vrot.lane.b32.xlu0 %v294, 48
        %v624 = vpop.permute.xlu0 %623
        %625 = vrot.lane.b32.xlu0 %v295, 48
        %v626 = vpop.permute.xlu0 %625
        %627 = vrot.lane.b32.xlu0 %v296, 48
        %v628 = vpop.permute.xlu0 %627
        %629 = vrot.lane.b32.xlu0 %v297, 48
        %v630 = vpop.permute.xlu0 %629
        %631 = vrot.lane.b32.xlu0 %v298, 48
        %v632 = vpop.permute.xlu0 %631
        %633 = vrot.lane.b32.xlu0 %v299, 48
        %v634 = vpop.permute.xlu0 %633
        %635 = vrot.lane.b32.xlu0 %v300, 48
        %v636 = vpop.permute.xlu0 %635
        %653 = vrot.lane.b32.xlu0 %v301, 56
        %v654 = vpop.permute.xlu0 %653
        %655 = vrot.lane.b32.xlu0 %v302, 56
        %v656 = vpop.permute.xlu0 %655
        %657 = vrot.lane.b32.xlu0 %v303, 56
        %v658 = vpop.permute.xlu0 %657
        %659 = vrot.lane.b32.xlu0 %v304, 56
        %v660 = vpop.permute.xlu0 %659
        %661 = vrot.lane.b32.xlu0 %v305, 56
        %v662 = vpop.permute.xlu0 %661
        %663 = vrot.lane.b32.xlu0 %v306, 56
        %v664 = vpop.permute.xlu0 %663
        %665 = vrot.lane.b32.xlu0 %v307, 56
        %v666 = vpop.permute.xlu0 %665
        %667 = vrot.lane.b32.xlu0 %v308, 56
        %v668 = vpop.permute.xlu0 %667
        %685 = vrot.lane.b32.xlu0 %v309, 64
        %v686 = vpop.permute.xlu0 %685
        %687 = vrot.lane.b32.xlu0 %v310, 64
        %v688 = vpop.permute.xlu0 %687
        %689 = vrot.lane.b32.xlu0 %v311, 64
        %v690 = vpop.permute.xlu0 %689
        %691 = vrot.lane.b32.xlu0 %v312, 64
        %v692 = vpop.permute.xlu0 %691
        %693 = vrot.lane.b32.xlu0 %v313, 64
        %v694 = vpop.permute.xlu0 %693
        %695 = vrot.lane.b32.xlu0 %v314, 64
        %v696 = vpop.permute.xlu0 %695
        %697 = vrot.lane.b32.xlu0 %v315, 64
        %v698 = vpop.permute.xlu0 %697
        %699 = vrot.lane.b32.xlu0 %v316, 64
        %v700 = vpop.permute.xlu0 %699
        %717 = vrot.lane.b32.xlu0 %v318, 72
        %v718 = vpop.permute.xlu0 %717
        %719 = vrot.lane.b32.xlu0 %v319, 72
        %v720 = vpop.permute.xlu0 %719
        %721 = vrot.lane.b32.xlu0 %v320, 72
        %v722 = vpop.permute.xlu0 %721
        %723 = vrot.lane.b32.xlu0 %v321, 72
        %v724 = vpop.permute.xlu0 %723
        %725 = vrot.lane.b32.xlu0 %v322, 72
        %v726 = vpop.permute.xlu0 %725
        %727 = vrot.lane.b32.xlu0 %v323, 72
        %v728 = vpop.permute.xlu0 %727
        %729 = vrot.lane.b32.xlu0 %v324, 72
        %v730 = vpop.permute.xlu0 %729
        %731 = vrot.lane.b32.xlu0 %v325, 72
        %v732 = vpop.permute.xlu0 %731
        %749 = vrot.lane.b32.xlu0 %v327, 80
        %v750 = vpop.permute.xlu0 %749
        %751 = vrot.lane.b32.xlu0 %v328, 80
        %v752 = vpop.permute.xlu0 %751
        %753 = vrot.lane.b32.xlu0 %v329, 80
        %v754 = vpop.permute.xlu0 %753
        %755 = vrot.lane.b32.xlu0 %v330, 80
        %v756 = vpop.permute.xlu0 %755
        %757 = vrot.lane.b32.xlu0 %v331, 80
        %v758 = vpop.permute.xlu0 %757
        %759 = vrot.lane.b32.xlu0 %v332, 80
        %v760 = vpop.permute.xlu0 %759
        %761 = vrot.lane.b32.xlu0 %v333, 80
        %v762 = vpop.permute.xlu0 %761
        %763 = vrot.lane.b32.xlu0 %v334, 80
        %v764 = vpop.permute.xlu0 %763
        %781 = vrot.lane.b32.xlu0 %v335, 88
        %v782 = vpop.permute.xlu0 %781
        %783 = vrot.lane.b32.xlu0 %v336, 88
        %v784 = vpop.permute.xlu0 %783
        %785 = vrot.lane.b32.xlu0 %v337, 88
        %v786 = vpop.permute.xlu0 %785
        %787 = vrot.lane.b32.xlu0 %v338, 88
        %v788 = vpop.permute.xlu0 %787
        %789 = vrot.lane.b32.xlu0 %v339, 88
        %v790 = vpop.permute.xlu0 %789
        %791 = vrot.lane.b32.xlu0 %v340, 88
        %v792 = vpop.permute.xlu0 %791
        %793 = vrot.lane.b32.xlu0 %v341, 88
        %v794 = vpop.permute.xlu0 %793
        %795 = vrot.lane.b32.xlu0 %v342, 88
        %v796 = vpop.permute.xlu0 %795
        %813 = vrot.lane.b32.xlu0 %v343, 96
        %v814 = vpop.permute.xlu0 %813
        %815 = vrot.lane.b32.xlu0 %v344, 96
        %v816 = vpop.permute.xlu0 %815
        %817 = vrot.lane.b32.xlu0 %v345, 96
        %v818 = vpop.permute.xlu0 %817
        %819 = vrot.lane.b32.xlu0 %v346, 96
        %v820 = vpop.permute.xlu0 %819
        %821 = vrot.lane.b32.xlu0 %v347, 96
        %v822 = vpop.permute.xlu0 %821
        %823 = vrot.lane.b32.xlu0 %v348, 96
        %v824 = vpop.permute.xlu0 %823
        %825 = vrot.lane.b32.xlu0 %v349, 96
        %v826 = vpop.permute.xlu0 %825
        %827 = vrot.lane.b32.xlu0 %v350, 96
        %v828 = vpop.permute.xlu0 %827
        %845 = vrot.lane.b32.xlu0 %v352, 104
        %v846 = vpop.permute.xlu0 %845
        %847 = vrot.lane.b32.xlu0 %v353, 104
        %v848 = vpop.permute.xlu0 %847
        %849 = vrot.lane.b32.xlu0 %v354, 104
        %v850 = vpop.permute.xlu0 %849
        %851 = vrot.lane.b32.xlu0 %v355, 104
        %v852 = vpop.permute.xlu0 %851
        %853 = vrot.lane.b32.xlu0 %v356, 104
        %v854 = vpop.permute.xlu0 %853
        %855 = vrot.lane.b32.xlu0 %v357, 104
        %v856 = vpop.permute.xlu0 %855
        %857 = vrot.lane.b32.xlu0 %v358, 104
        %v858 = vpop.permute.xlu0 %857
        %859 = vrot.lane.b32.xlu0 %v359, 104
        %v860 = vpop.permute.xlu0 %859
        %877 = vrot.lane.b32.xlu0 %v361, 112
        %v878 = vpop.permute.xlu0 %877
        %879 = vrot.lane.b32.xlu0 %v362, 112
        %v880 = vpop.permute.xlu0 %879
        %881 = vrot.lane.b32.xlu0 %v363, 112
        %v882 = vpop.permute.xlu0 %881
        %883 = vrot.lane.b32.xlu0 %v364, 112
        %v884 = vpop.permute.xlu0 %883
        %885 = vrot.lane.b32.xlu0 %v365, 112
        %v886 = vpop.permute.xlu0 %885
        %887 = vrot.lane.b32.xlu0 %v366, 112
        %v888 = vpop.permute.xlu0 %887
        %889 = vrot.lane.b32.xlu0 %v367, 112
        %v890 = vpop.permute.xlu0 %889
        %891 = vrot.lane.b32.xlu0 %v368, 112
        %v892 = vpop.permute.xlu0 %891
        %909 = vrot.lane.b32.xlu0 %v369, 120
        %v910 = vpop.permute.xlu0 %909
        %911 = vrot.lane.b32.xlu0 %v370, 120
        %v912 = vpop.permute.xlu0 %911
        %913 = vrot.lane.b32.xlu0 %v371, 120
        %v914 = vpop.permute.xlu0 %913
        %915 = vrot.lane.b32.xlu0 %v372, 120
        %v916 = vpop.permute.xlu0 %915
        %917 = vrot.lane.b32.xlu0 %v373, 120
        %v918 = vpop.permute.xlu0 %917
        %919 = vrot.lane.b32.xlu0 %v374, 120
        %v920 = vpop.permute.xlu0 %919
        %921 = vrot.lane.b32.xlu0 %v375, 120
        %v922 = vpop.permute.xlu0 %921
        %923 = vrot.lane.b32.xlu0 %v376, 120
        %v924 = vpop.permute.xlu0 %923
        %vm933 = vcmask 64512
        %v934 = vsel %vm933, %v243, %v462
        %v935 = vsel %vm933, %v244, %v464
        %v936 = vsel %vm933, %v245, %v466
        %v937 = vsel %vm933, %v246, %v468
        %v938 = vsel %vm933, %v247, %v470
        %v939 = vsel %vm933, %v248, %v472
        %v940 = vsel %vm933, %v249, %v474
        %v941 = vsel %vm933, %v250, %v476
        %vm942 = vcmask 130048
        %v943 = vsel %vm942, %v934, %v494
        %v944 = vsel %vm942, %v935, %v496
        %v945 = vsel %vm942, %v936, %v498
        %v946 = vsel %vm942, %v937, %v500
        %v947 = vsel %vm942, %v938, %v502
        %v948 = vsel %vm942, %v939, %v504
        %v949 = vsel %vm942, %v940, %v506
        %v950 = vsel %vm942, %v941, %v508
        %vm951 = vcmask 195584
        %v952 = vsel %vm951, %v943, %v526
        %v953 = vsel %vm951, %v944, %v528
        %v954 = vsel %vm951, %v945, %v530
        %v955 = vsel %vm951, %v946, %v532
        %v956 = vsel %vm951, %v947, %v534
        %v957 = vsel %vm951, %v948, %v536
        %v958 = vsel %vm951, %v949, %v538
        %v959 = vsel %vm951, %v950, %v540
        %vm960 = vcmask 261120
        %v961 = vsel %vm960, %v952, %v558
        %v962 = vsel %vm960, %v953, %v560
        %v963 = vsel %vm960, %v954, %v562
        %v964 = vsel %vm960, %v955, %v564
        %v965 = vsel %vm960, %v956, %v566
        %v966 = vsel %vm960, %v957, %v568
        %v967 = vsel %vm960, %v958, %v570
        %v968 = vsel %vm960, %v959, %v572
        %vm969 = vcmask 326656
        %v970 = vsel %vm969, %v961, %v590
        %v971 = vsel %vm969, %v962, %v592
        %v972 = vsel %vm969, %v963, %v594
        %v973 = vsel %vm969, %v964, %v596
        %v974 = vsel %vm969, %v965, %v598
        %v975 = vsel %vm969, %v966, %v600
        %v976 = vsel %vm969, %v967, %v602
        %v977 = vsel %vm969, %v968, %v604
        %vm978 = vcmask 392192
        %v979 = vsel %vm978, %v970, %v622
        %v980 = vsel %vm978, %v971, %v624
        %v981 = vsel %vm978, %v972, %v626
        %v982 = vsel %vm978, %v973, %v628
        %v983 = vsel %vm978, %v974, %v630
        %v984 = vsel %vm978, %v975, %v632
        %v985 = vsel %vm978, %v976, %v634
        %v986 = vsel %vm978, %v977, %v636
        %vm987 = vcmask 457728
        %v988 = vsel %vm987, %v979, %v654
        %v989 = vsel %vm987, %v980, %v656
        %v990 = vsel %vm987, %v981, %v658
        %v991 = vsel %vm987, %v982, %v660
        %v992 = vsel %vm987, %v983, %v662
        %v993 = vsel %vm987, %v984, %v664
        %v994 = vsel %vm987, %v985, %v666
        %v995 = vsel %vm987, %v986, %v668
        %vm996 = vcmask 523264
        %v997 = vsel %vm996, %v988, %v686
        %v998 = vsel %vm996, %v989, %v688
        %v999 = vsel %vm996, %v990, %v690
        %v1000 = vsel %vm996, %v991, %v692
        %v1001 = vsel %vm996, %v992, %v694
        %v1002 = vsel %vm996, %v993, %v696
        %v1003 = vsel %vm996, %v994, %v698
        %v1004 = vsel %vm996, %v995, %v700
        %vm1005 = vcmask 588800
        %v1006 = vsel %vm1005, %v997, %v718
        %v1007 = vsel %vm1005, %v998, %v720
        %v1008 = vsel %vm1005, %v999, %v722
        %v1009 = vsel %vm1005, %v1000, %v724
        %v1010 = vsel %vm1005, %v1001, %v726
        %v1011 = vsel %vm1005, %v1002, %v728
        %v1012 = vsel %vm1005, %v1003, %v730
        %v1013 = vsel %vm1005, %v1004, %v732
        %vm1014 = vcmask 654336
        %v1015 = vsel %vm1014, %v1006, %v750
        %v1016 = vsel %vm1014, %v1007, %v752
        %v1017 = vsel %vm1014, %v1008, %v754
        %v1018 = vsel %vm1014, %v1009, %v756
        %v1019 = vsel %vm1014, %v1010, %v758
        %v1020 = vsel %vm1014, %v1011, %v760
        %v1021 = vsel %vm1014, %v1012, %v762
        %v1022 = vsel %vm1014, %v1013, %v764
        %vm1023 = vcmask 719872
        %v1024 = vsel %vm1023, %v1015, %v782
        %v1025 = vsel %vm1023, %v1016, %v784
        %v1026 = vsel %vm1023, %v1017, %v786
        %v1027 = vsel %vm1023, %v1018, %v788
        %v1028 = vsel %vm1023, %v1019, %v790
        %v1029 = vsel %vm1023, %v1020, %v792
        %v1030 = vsel %vm1023, %v1021, %v794
        %v1031 = vsel %vm1023, %v1022, %v796
        %vm1032 = vcmask 785408
        %v1033 = vsel %vm1032, %v1024, %v814
        %v1034 = vsel %vm1032, %v1025, %v816
        %v1035 = vsel %vm1032, %v1026, %v818
        %v1036 = vsel %vm1032, %v1027, %v820
        %v1037 = vsel %vm1032, %v1028, %v822
        %v1038 = vsel %vm1032, %v1029, %v824
        %v1039 = vsel %vm1032, %v1030, %v826
        %v1040 = vsel %vm1032, %v1031, %v828
        %vm1041 = vcmask 850944
        %v1042 = vsel %vm1041, %v1033, %v846
        %v1043 = vsel %vm1041, %v1034, %v848
        %v1044 = vsel %vm1041, %v1035, %v850
        %v1045 = vsel %vm1041, %v1036, %v852
        %v1046 = vsel %vm1041, %v1037, %v854
        %v1047 = vsel %vm1041, %v1038, %v856
        %v1048 = vsel %vm1041, %v1039, %v858
        %v1049 = vsel %vm1041, %v1040, %v860
        %vm1050 = vcmask 916480
        %v1051 = vsel %vm1050, %v1042, %v878
        %v1052 = vsel %vm1050, %v1043, %v880
        %v1053 = vsel %vm1050, %v1044, %v882
        %v1054 = vsel %vm1050, %v1045, %v884
        %v1055 = vsel %vm1050, %v1046, %v886
        %v1056 = vsel %vm1050, %v1047, %v888
        %v1057 = vsel %vm1050, %v1048, %v890
        %v1058 = vsel %vm1050, %v1049, %v892
        %vm1059 = vcmask 982016
        %v1060 = vsel %vm1059, %v1051, %v910
        %v1061 = vsel %vm1059, %v1052, %v912
        %v1062 = vsel %vm1059, %v1053, %v914
        %v1063 = vsel %vm1059, %v1054, %v916
        %v1064 = vsel %vm1059, %v1055, %v918
        %v1065 = vsel %vm1059, %v1056, %v920
        %v1066 = vsel %vm1059, %v1057, %v922
        %v1067 = vsel %vm1059, %v1058, %v924
        %1076 = vrot.lane.b32.xlu0 %v386, 8
        %v1077 = vpop.permute.xlu0 %1076
        %1078 = vrot.lane.b32.xlu0 %v387, 8
        %v1079 = vpop.permute.xlu0 %1078
        %1080 = vrot.lane.b32.xlu0 %v388, 8
        %v1081 = vpop.permute.xlu0 %1080
        %1082 = vrot.lane.b32.xlu0 %v389, 8
        %v1083 = vpop.permute.xlu0 %1082
        %1084 = vrot.lane.b32.xlu0 %v390, 8
        %v1085 = vpop.permute.xlu0 %1084
        %1086 = vrot.lane.b32.xlu0 %v391, 8
        %v1087 = vpop.permute.xlu0 %1086
        %1088 = vrot.lane.b32.xlu0 %v392, 8
        %v1089 = vpop.permute.xlu0 %1088
        %1090 = vrot.lane.b32.xlu0 %v393, 8
        %v1091 = vpop.permute.xlu0 %1090
        %1108 = vrot.lane.b32.xlu0 %v395, 16
        %v1109 = vpop.permute.xlu0 %1108
        %1110 = vrot.lane.b32.xlu0 %v396, 16
        %v1111 = vpop.permute.xlu0 %1110
        %1112 = vrot.lane.b32.xlu0 %v397, 16
        %v1113 = vpop.permute.xlu0 %1112
        %1114 = vrot.lane.b32.xlu0 %v398, 16
        %v1115 = vpop.permute.xlu0 %1114
        %1116 = vrot.lane.b32.xlu0 %v399, 16
        %v1117 = vpop.permute.xlu0 %1116
        %1118 = vrot.lane.b32.xlu0 %v400, 16
        %v1119 = vpop.permute.xlu0 %1118
        %1120 = vrot.lane.b32.xlu0 %v401, 16
        %v1121 = vpop.permute.xlu0 %1120
        %1122 = vrot.lane.b32.xlu0 %v402, 16
        %v1123 = vpop.permute.xlu0 %1122
        %1140 = vrot.lane.b32.xlu0 %v403, 24
        %v1141 = vpop.permute.xlu0 %1140
        %1142 = vrot.lane.b32.xlu0 %v404, 24
        %v1143 = vpop.permute.xlu0 %1142
        %1144 = vrot.lane.b32.xlu0 %v405, 24
        %v1145 = vpop.permute.xlu0 %1144
        %1146 = vrot.lane.b32.xlu0 %v406, 24
        %v1147 = vpop.permute.xlu0 %1146
        %1148 = vrot.lane.b32.xlu0 %v407, 24
        %v1149 = vpop.permute.xlu0 %1148
        %1150 = vrot.lane.b32.xlu0 %v408, 24
        %v1151 = vpop.permute.xlu0 %1150
        %1152 = vrot.lane.b32.xlu0 %v409, 24
        %v1153 = vpop.permute.xlu0 %1152
        %1154 = vrot.lane.b32.xlu0 %v410, 24
        %v1155 = vpop.permute.xlu0 %1154
        %1172 = vrot.lane.b32.xlu0 %v411, 32
        %v1173 = vpop.permute.xlu0 %1172
        %1174 = vrot.lane.b32.xlu0 %v412, 32
        %v1175 = vpop.permute.xlu0 %1174
        %1176 = vrot.lane.b32.xlu0 %v413, 32
        %v1177 = vpop.permute.xlu0 %1176
        %1178 = vrot.lane.b32.xlu0 %v414, 32
        %v1179 = vpop.permute.xlu0 %1178
        %1180 = vrot.lane.b32.xlu0 %v415, 32
        %v1181 = vpop.permute.xlu0 %1180
        %1182 = vrot.lane.b32.xlu0 %v416, 32
        %v1183 = vpop.permute.xlu0 %1182
        %1184 = vrot.lane.b32.xlu0 %v417, 32
        %v1185 = vpop.permute.xlu0 %1184
        %1186 = vrot.lane.b32.xlu0 %v418, 32
        %v1187 = vpop.permute.xlu0 %1186
        %1204 = vrot.lane.b32.xlu0 %v420, 40
        %v1205 = vpop.permute.xlu0 %1204
        %1206 = vrot.lane.b32.xlu0 %v421, 40
        %v1207 = vpop.permute.xlu0 %1206
        %1208 = vrot.lane.b32.xlu0 %v422, 40
        %v1209 = vpop.permute.xlu0 %1208
        %1210 = vrot.lane.b32.xlu0 %v423, 40
        %v1211 = vpop.permute.xlu0 %1210
        %1212 = vrot.lane.b32.xlu0 %v424, 40
        %v1213 = vpop.permute.xlu0 %1212
        %1214 = vrot.lane.b32.xlu0 %v425, 40
        %v1215 = vpop.permute.xlu0 %1214
        %1216 = vrot.lane.b32.xlu0 %v426, 40
        %v1217 = vpop.permute.xlu0 %1216
        %1218 = vrot.lane.b32.xlu0 %v427, 40
        %v1219 = vpop.permute.xlu0 %1218
        %1236 = vrot.lane.b32.xlu0 %v429, 48
        %v1237 = vpop.permute.xlu0 %1236
        %1238 = vrot.lane.b32.xlu0 %v430, 48
        %v1239 = vpop.permute.xlu0 %1238
        %1240 = vrot.lane.b32.xlu0 %v431, 48
        %v1241 = vpop.permute.xlu0 %1240
        %1242 = vrot.lane.b32.xlu0 %v432, 48
        %v1243 = vpop.permute.xlu0 %1242
        %1244 = vrot.lane.b32.xlu0 %v433, 48
        %v1245 = vpop.permute.xlu0 %1244
        %1246 = vrot.lane.b32.xlu0 %v434, 48
        %v1247 = vpop.permute.xlu0 %1246
        %1248 = vrot.lane.b32.xlu0 %v435, 48
        %v1249 = vpop.permute.xlu0 %1248
        %1250 = vrot.lane.b32.xlu0 %v436, 48
        %v1251 = vpop.permute.xlu0 %1250
        %1268 = vrot.lane.b32.xlu0 %v437, 56
        %v1269 = vpop.permute.xlu0 %1268
        %1270 = vrot.lane.b32.xlu0 %v438, 56
        %v1271 = vpop.permute.xlu0 %1270
        %1272 = vrot.lane.b32.xlu0 %v439, 56
        %v1273 = vpop.permute.xlu0 %1272
        %1274 = vrot.lane.b32.xlu0 %v440, 56
        %v1275 = vpop.permute.xlu0 %1274
        %1276 = vrot.lane.b32.xlu0 %v441, 56
        %v1277 = vpop.permute.xlu0 %1276
        %1278 = vrot.lane.b32.xlu0 %v442, 56
        %v1279 = vpop.permute.xlu0 %1278
        %1280 = vrot.lane.b32.xlu0 %v443, 56
        %v1281 = vpop.permute.xlu0 %1280
        %1282 = vrot.lane.b32.xlu0 %v444, 56
        %v1283 = vpop.permute.xlu0 %1282
        %1300 = vrot.lane.b32.xlu0 %v445, 64
        %v1301 = vpop.permute.xlu0 %1300
        %1302 = vrot.lane.b32.xlu0 %v446, 64
        %v1303 = vpop.permute.xlu0 %1302
        %1304 = vrot.lane.b32.xlu0 %v447, 64
        %v1305 = vpop.permute.xlu0 %1304
        %1306 = vrot.lane.b32.xlu0 %v448, 64
        %v1307 = vpop.permute.xlu0 %1306
        %1308 = vrot.lane.b32.xlu0 %v449, 64
        %v1309 = vpop.permute.xlu0 %1308
        %1310 = vrot.lane.b32.xlu0 %v450, 64
        %v1311 = vpop.permute.xlu0 %1310
        %1312 = vrot.lane.b32.xlu0 %v451, 64
        %v1313 = vpop.permute.xlu0 %1312
        %1314 = vrot.lane.b32.xlu0 %v452, 64
        %v1315 = vpop.permute.xlu0 %1314
        %v1324 = vsel %vm933, %v377, %v1077
        %v1325 = vsel %vm933, %v378, %v1079
        %v1326 = vsel %vm933, %v379, %v1081
        %v1327 = vsel %vm933, %v380, %v1083
        %v1328 = vsel %vm933, %v381, %v1085
        %v1329 = vsel %vm933, %v382, %v1087
        %v1330 = vsel %vm933, %v383, %v1089
        %v1331 = vsel %vm933, %v384, %v1091
        %v1332 = vsel %vm942, %v1324, %v1109
        %v1333 = vsel %vm942, %v1325, %v1111
        %v1334 = vsel %vm942, %v1326, %v1113
        %v1335 = vsel %vm942, %v1327, %v1115
        %v1336 = vsel %vm942, %v1328, %v1117
        %v1337 = vsel %vm942, %v1329, %v1119
        %v1338 = vsel %vm942, %v1330, %v1121
        %v1339 = vsel %vm942, %v1331, %v1123
        %v1340 = vsel %vm951, %v1332, %v1141
        %v1341 = vsel %vm951, %v1333, %v1143
        %v1342 = vsel %vm951, %v1334, %v1145
        %v1343 = vsel %vm951, %v1335, %v1147
        %v1344 = vsel %vm951, %v1336, %v1149
        %v1345 = vsel %vm951, %v1337, %v1151
        %v1346 = vsel %vm951, %v1338, %v1153
        %v1347 = vsel %vm951, %v1339, %v1155
        %v1348 = vsel %vm960, %v1340, %v1173
        %v1349 = vsel %vm960, %v1341, %v1175
        %v1350 = vsel %vm960, %v1342, %v1177
        %v1351 = vsel %vm960, %v1343, %v1179
        %v1352 = vsel %vm960, %v1344, %v1181
        %v1353 = vsel %vm960, %v1345, %v1183
        %v1354 = vsel %vm960, %v1346, %v1185
        %v1355 = vsel %vm960, %v1347, %v1187
        %v1356 = vsel %vm969, %v1348, %v1205
        %v1357 = vsel %vm969, %v1349, %v1207
        %v1358 = vsel %vm969, %v1350, %v1209
        %v1359 = vsel %vm969, %v1351, %v1211
        %v1360 = vsel %vm969, %v1352, %v1213
        %v1361 = vsel %vm969, %v1353, %v1215
        %v1362 = vsel %vm969, %v1354, %v1217
        %v1363 = vsel %vm969, %v1355, %v1219
        %v1364 = vsel %vm978, %v1356, %v1237
        %v1365 = vsel %vm978, %v1357, %v1239
        %v1366 = vsel %vm978, %v1358, %v1241
        %v1367 = vsel %vm978, %v1359, %v1243
        %v1368 = vsel %vm978, %v1360, %v1245
        %v1369 = vsel %vm978, %v1361, %v1247
        %v1370 = vsel %vm978, %v1362, %v1249
        %v1371 = vsel %vm978, %v1363, %v1251
        %v1372 = vsel %vm987, %v1364, %v1269
        %v1373 = vsel %vm987, %v1365, %v1271
        %v1374 = vsel %vm987, %v1366, %v1273
        %v1375 = vsel %vm987, %v1367, %v1275
        %v1376 = vsel %vm987, %v1368, %v1277
        %v1377 = vsel %vm987, %v1369, %v1279
        %v1378 = vsel %vm987, %v1370, %v1281
        %v1379 = vsel %vm987, %v1371, %v1283
        %v1380 = vsel %vm996, %v1372, %v1301
        %v1381 = vsel %vm996, %v1373, %v1303
        %v1382 = vsel %vm996, %v1374, %v1305
        %v1383 = vsel %vm996, %v1375, %v1307
        %v1384 = vsel %vm996, %v1376, %v1309
        %v1385 = vsel %vm996, %v1377, %v1311
        %v1386 = vsel %vm996, %v1378, %v1313
        %v1387 = vsel %vm996, %v1379, %v1315
        %v1388 = vld [vmem:[%s2] sm:$0xff]
        %v1389 = vld [vmem:[%s2 + $0x8] sm:$0xff]
        %v1390 = vld [vmem:[%s2 + $0x10] sm:$0xff]
        %v1391 = vld [vmem:[%s2 + $0x18] sm:$0xff]
        %v1392 = vld [vmem:[%s2 + $0x20] sm:$0xff]
        %v1393 = vld [vmem:[%s2 + $0x28] sm:$0xff]
        %v1394 = vld [vmem:[%s2 + $0x30] sm:$0xff]
        %v1395 = vld [vmem:[%s2 + $0x38] sm:$0xff]
        %v1396 = vld [vmem:[%s2 + $0x40] sm:$0xff]
        %v1397 = vld [vmem:[%s2 + $0x48] sm:$0xff]
        %v1398 = vld [vmem:[%s2 + $0x50] sm:$0xff]
        %v1399 = vld [vmem:[%s2 + $0x58] sm:$0xff]
        %v1400 = vld [vmem:[%s2 + $0x60] sm:$0xff]
        %v1401 = vld [vmem:[%s2 + $0x68] sm:$0xff]
        %v1402 = vld [vmem:[%s2 + $0x70] sm:$0xff]
        %v1403 = vld [vmem:[%s2 + $0x78] sm:$0xff]
        %v1404 = vld [vmem:[%s2 + $0x80] sm:$0xff]
        %v1405 = vld [vmem:[%s2 + $0x88] sm:$0xff]
        %v1406 = vld [vmem:[%s2 + $0x90] sm:$0xff]
        %v1407 = vld [vmem:[%s2 + $0x98] sm:$0xff]
        %v1408 = vld [vmem:[%s2 + $0xa0] sm:$0xff]
        %v1409 = vld [vmem:[%s2 + $0xa8] sm:$0xff]
        %v1410 = vld [vmem:[%s2 + $0xb0] sm:$0xff]
        %v1411 = vld [vmem:[%s2 + $0xb8] sm:$0xff]
        %v1412 = vld [vmem:[%s2 + $0xc0] sm:$0xff]
        %v1413 = vld [vmem:[%s3] sm:$0x1]
        %v1415 = vlaneseq
        %v1416 = vshrl.u32 %v1415, 7
        %v1417 = vsub.s32 0, %v1416
        %v1418 = vrot.slane %v1413, %v1417
        %v1421 = vsel %vm1005, %v1380, 0
        %v1424 = vsel %vm1005, %v1381, 0
        %v1427 = vsel %vm1005, %v1382, 0
        %v1430 = vsel %vm1005, %v1383, 0
        %v1433 = vsel %vm1005, %v1384, 0
        %v1436 = vsel %vm1005, %v1385, 0
        %v1439 = vsel %vm1005, %v1386, 0
        %v1442 = vsel %vm1005, %v1387, 0
        %1444 = vmatprep.subr.mxu0 0.0
        %1445 = vmatpush1.msra.mxu0 %v1388
        %1446 = vmatprep.subr.mxu0 0.0
        %1447 = vmatpush1.msra.mxu0 %v1389
        %1448 = vmatprep.subr.mxu0 0.0
        %1449 = vmatpush1.msra.mxu0 %v1390
        %1450 = vmatprep.subr.mxu0 0.0
        %1451 = vmatpush1.msra.mxu0 %v1391
        %1452 = vmatprep.subr.mxu0 0.0
        %1453 = vmatpush1.msra.mxu0 %v1392
        %1454 = vmatprep.subr.mxu0 0.0
        %1455 = vmatpush1.msra.mxu0 %v1393
        %1456 = vmatprep.subr.mxu0 0.0
        %1457 = vmatpush1.msra.mxu0 %v1394
        %1458 = vmatprep.subr.mxu0 0.0
        %1459 = vmatpush1.msra.mxu0 %v1395
        %1460 = vmatprep.subr.mxu0 0.0
        %1461 = vmatpush1.msra.mxu0 %v1396
        %1462 = vmatprep.subr.mxu0 0.0
        %1463 = vmatpush1.msra.mxu0 %v1397
        %1464 = vmatprep.subr.mxu0 0.0
        %1465 = vmatpush1.msra.mxu0 %v1398
        %1466 = vmatprep.subr.mxu0 0.0
        %1467 = vmatpush1.msra.mxu0 %v1399
        %1468 = vmatprep.subr.mxu0 0.0
        %1469 = vmatpush1.msra.mxu0 %v1400
        %1470 = vmatprep.subr.mxu0 0.0
        %1471 = vmatpush1.msra.mxu0 %v1401
        %1472 = vmatprep.subr.mxu0 0.0
        %1473 = vmatpush1.msra.mxu0 %v1402
        %1474 = vmatprep.subr.mxu0 0.0
        %1475 = vmatpush1.msra.mxu0 %v1403
        %1476 = vmatprep.subr.mxu0 0.0
        %1477 = vmatpush1.msra.mxu0 %v1404
        %1478 = vmatprep.subr.mxu0 0.0
        %1479 = vmatpush1.msra.mxu0 %v1405
        %1480 = vmatprep.subr.mxu0 0.0
        %1481 = vmatpush1.msra.mxu0 %v1406
        %1482 = vmatprep.subr.mxu0 0.0
        %1483 = vmatpush1.msra.mxu0 %v1407
        %1484 = vmatprep.subr.mxu0 0.0
        %1485 = vmatpush1.msra.mxu0 %v1408
        %1486 = vmatprep.subr.mxu0 0.0
        %1487 = vmatpush1.msra.mxu0 %v1409
        %1488 = vmatprep.subr.mxu0 0.0
        %1489 = vmatpush1.msra.mxu0 %v1410
        %1490 = vmatprep.subr.mxu0 0.0
        %1491 = vmatpush1.msra.mxu0 %v1411
        %1492 = vmatprep.subr.mxu0 0.0
        %1493 = vmatpush1.msra.mxu0 %v1412
        %1494 = vmatprep.subr.mxu0 0.0
        %1495 = vmatpush1.msra.mxu0 0.0
        %1496 = vmatprep.subr.mxu0 0.0
        %1497 = vmatpush1.msra.mxu0 0.0
        %1498 = vmatprep.subr.mxu0 0.0
        %1499 = vmatpush1.msra.mxu0 0.0
        %1500 = vmatprep.subr.mxu0 0.0
        %1501 = vmatpush1.msra.mxu0 0.0
        %1502 = vmatprep.subr.mxu0 0.0
        %1503 = vmatpush1.msra.mxu0 0.0
        %1504 = vmatprep.subr.mxu0 0.0
        %1505 = vmatpush1.msra.mxu0 0.0
        %1506 = vmatprep.subr.mxu0 0.0
        %1507 = vmatpush1.msra.mxu0 0.0
        %1508 = vmatprep.mubr.f32.mxu0 %v1421
        %1509 = vmatmul.mubr.f32.gmra.mrb[0].mxu0 %v1060
        %v1510 = vpop.f32.mrb[0].mxu0
        %v1511 = vadd.f32 %v1418, %v1510
        %v1512 = vpop.f32.mrb[0].mxu0
        %1513 = vmatprep.mubr.f32.mxu0 %v1424
        %1514 = vmatmul.mubr.f32.gmra.mrb[0].mxu0 %v1061
        %v1515 = vpop.f32.mrb[0].mxu0
        %v1516 = vadd.f32 %v1418, %v1515
        %v1517 = vpop.f32.mrb[0].mxu0
        %1518 = vmatprep.mubr.f32.mxu0 %v1427
        %1519 = vmatmul.mubr.f32.gmra.mrb[0].mxu0 %v1062
        %v1520 = vpop.f32.mrb[0].mxu0
        %v1521 = vadd.f32 %v1418, %v1520
        %v1522 = vpop.f32.mrb[0].mxu0
        %1523 = vmatprep.mubr.f32.mxu0 %v1430
        %1524 = vmatmul.mubr.f32.gmra.mrb[0].mxu0 %v1063
        %v1525 = vpop.f32.mrb[0].mxu0
        %v1526 = vadd.f32 %v1418, %v1525
        %v1527 = vpop.f32.mrb[0].mxu0
        %1528 = vmatprep.mubr.f32.mxu0 %v1433
        %1529 = vmatmul.mubr.f32.gmra.mrb[0].mxu0 %v1064
        %v1530 = vpop.f32.mrb[0].mxu0
        %v1531 = vadd.f32 %v1418, %v1530
        %v1532 = vpop.f32.mrb[0].mxu0
        %1533 = vmatprep.mubr.f32.mxu0 %v1436
        %1534 = vmatmul.mubr.f32.gmra.mrb[0].mxu0 %v1065
        %v1535 = vpop.f32.mrb[0].mxu0
        %v1536 = vadd.f32 %v1418, %v1535
        %v1537 = vpop.f32.mrb[0].mxu0
        %1538 = vmatprep.mubr.f32.mxu0 %v1439
        %1539 = vmatmul.mubr.f32.gmra.mrb[0].mxu0 %v1066
        %v1540 = vpop.f32.mrb[0].mxu0
        %v1541 = vadd.f32 %v1418, %v1540
        %v1542 = vpop.f32.mrb[0].mxu0
        %1543 = vmatprep.mubr.f32.mxu0 %v1442
        %1544 = vmatmul.mubr.f32.gmra.mrb[0].mxu0 %v1067
        %v1545 = vpop.f32.mrb[0].mxu0
        %v1546 = vadd.f32 %v1418, %v1545
        %v1547 = vpop.f32.mrb[0].mxu0
        %1548 = vdwg.mxu0
        %vm1549 = vcmp.ge.f32.partialorder %v1511, 0.0
        %vm1550 = vcmp.ge.f32.partialorder %v1516, 0.0
        %vm1551 = vcmp.ge.f32.partialorder %v1521, 0.0
        %vm1552 = vcmp.ge.f32.partialorder %v1526, 0.0
        %vm1553 = vcmp.ge.f32.partialorder %v1531, 0.0
        %vm1554 = vcmp.ge.f32.partialorder %v1536, 0.0
        %vm1555 = vcmp.ge.f32.partialorder %v1541, 0.0
        %vm1556 = vcmp.ge.f32.partialorder %v1546, 0.0
        %v1557 = vld [vmem:[%s4] sm:$0x1]
        %v1559 = vlaneseq
        %v1560 = vshrl.u32 %v1559, 7
        %v1561 = vsub.s32 0, %v1560
        %v1562 = vrot.slane %v1557, %v1561
        %v1564 = vmul.f32 %v1562, %v1511
        %v1565 = vmul.f32 %v1562, %v1516
        %v1566 = vmul.f32 %v1562, %v1521
        %v1567 = vmul.f32 %v1562, %v1526
        %v1568 = vmul.f32 %v1562, %v1531
        %v1569 = vmul.f32 %v1562, %v1536
        %v1570 = vmul.f32 %v1562, %v1541
        %v1571 = vmul.f32 %v1562, %v1546
        %v1572 = vsel %vm1549, %v1511, %v1564
        %v1573 = vsel %vm1550, %v1516, %v1565
        %v1574 = vsel %vm1551, %v1521, %v1566
        %v1575 = vsel %vm1552, %v1526, %v1567
        %v1576 = vsel %vm1553, %v1531, %v1568
        %v1577 = vsel %vm1554, %v1536, %v1569
        %v1578 = vsel %vm1555, %v1541, %v1570
        %v1579 = vsel %vm1556, %v1546, %v1571
        %1580 = vst.msk [vmem:[%s232] sm:$0xff] %vm960, %v1572
        %1581 = vst.msk [vmem:[%s232 + $0x8] sm:$0xff] %vm960, %v1573
        %1582 = vst.msk [vmem:[%s232 + $0x10] sm:$0xff] %vm960, %v1574
        %1583 = vst.msk [vmem:[%s232 + $0x18] sm:$0xff] %vm960, %v1575
        %1584 = vst.msk [vmem:[%s232 + $0x20] sm:$0xff] %vm960, %v1576
        %1585 = vst.msk [vmem:[%s232 + $0x28] sm:$0xff] %vm960, %v1577
        %1586 = vst.msk [vmem:[%s232 + $0x30] sm:$0xff] %vm960, %v1578
        %1587 = vst.msk [vmem:[%s232 + $0x38] sm:$0xff] %vm960, %v1579
        %s1588 = sand.u32 %s142, 1
        %s1589 = scalar_lea.sflag [#allocation3], %s1588
        %s1590 = sand.u32 %s142, 1
        %s1591 = smul.addr %s1590, 64
        %s1592 = scalar_lea.vmem [#allocation2], %s1591
        // Predicated region
        $region41: #{tpu_custom_call.1} parent=39 // pred_check
          %p1593 = pneg %p152
        $region42: #{tpu_custom_call.1} parent=39 // pred_check_branch
          %1595 = sbr.rel (%p1593) target = $region44
        $region43: #{tpu_custom_call.1} parent=39 // pred_region
          %s1597 = ssub.s32 1024, 1024
          %1598 = vsyncadd %s1589, %s1597
          %s1599 = smul.addr %s19, 8
          %s1600 = smul.addr %s1599, 128
          %s1601 = scalar_lea.hbm %s5, %s1600
          %s1602 = sshll.u32 %s1592, 4
          %s1603 = int_to_ptr.vmem [resolvable:$true] %s1602
          %1608 = dma.vmem_to_hbm [thread:$0]  %s1603, 1024, %s1601, %s1589, 128, 128, 8
        $region44: #{tpu_custom_call.1} parent=39 // pred_fallthru
          _
      $region40: #{tpu_custom_call.1} parent=5 // pred_fallthru
        _
      %p1609 = scmp.le.s32.totalorder 2, %s14
      // Predicated region
      $region45: #{tpu_custom_call.1} parent=5 // pred_check
        %p1610 = pneg %p1609
      $region46: #{tpu_custom_call.1} parent=5 // pred_check_branch
        %1612 = sbr.rel (%p1610) target = $region48
      $region47: #{tpu_custom_call.1} parent=5 // pred_region
        %s1613 = ssub.s32 %s14, 2
        // Predicated region
        $region49: #{tpu_custom_call.1} parent=47 // pred_check
          %p1614 = pneg %p158
        $region50: #{tpu_custom_call.1} parent=47 // pred_check_branch
          %1616 = sbr.rel (%p1614) target = $region52
        $region51: #{tpu_custom_call.1} parent=47 // pred_region
          %s1617 = sand.u32 %s143, 1
          %s1618 = scalar_lea.sflag [#allocation3], %s1617
          %s1619 = sand.u32 %s143, 1
          %s1620 = smul.addr %s1619, 64
          %s1621 = scalar_lea.vmem [#allocation2], %s1620
          %1622 = dma.done %s1618, 1024
        $region52: #{tpu_custom_call.1} parent=47 // pred_fallthru
          _
      $region48: #{tpu_custom_call.1} parent=5 // pred_fallthru
        _
    $region6: #{tpu_custom_call.1} parent=1 // loop_footer
      %s18 = sadd.s32 1, %s14
    $region7: #{tpu_custom_call.1} parent=1 // loop_footer_branch
      %13 = sbr.rel target = $region3
    $region8: #{tpu_custom_call.1} parent=1 // loop_exit
      _
    %1623 = vsyncpa [#allocation3], 1
    %s1624 = scalar_lea.sflag [#allocation3], 1
    %1625 = vsyncpa %s1624, 1

</llo_original>
